<compile_context>
chip_gen: v6e
topology: v6e:2x2x1
jax: 0.10.0
libtpu: 0.0.40
codegen_flags: <defaults>
</compile_context>

<pallas_src>
import jax
import jax.numpy as jnp
from jax import lax
from jax.experimental import pallas as pl
from jax.experimental.pallas import tpu as pltpu


def dsconv_kernel(x_ref, dw_w_ref, pw_w_ref, pw_b_ref, o_ref, xpad_ref):
    # x_ref:    (Nb, C, H, W)       VMEM, unpadded input images
    # dw_w_ref: (C*9,)              SMEM, depthwise 3x3 weights, index c*9 + dy*3 + dx
    # pw_w_ref: (Cout*C,)           SMEM, pointwise weights, index co*C + c
    # pw_b_ref: (Cout,)             SMEM, pointwise bias (+ folded depthwise bias)
    # o_ref:    (Nb, Cout, H, W)    VMEM
    # xpad_ref: (C, H+2, W+2)       VMEM scratch, halo-padded channel planes
    Nb = x_ref.shape[0]
    C = x_ref.shape[1]
    Cout = o_ref.shape[1]
    H = o_ref.shape[2]
    W = o_ref.shape[3]

    # Zero the halo scratch once per grid step (unconditional, so it is safe
    # under "parallel" megacore sharding).  The interior is fully overwritten
    # for every image below, so the 1-pixel border stays zero == pad=1.
    xpad_ref[...] = jnp.zeros_like(xpad_ref)

    # Static unrolled loop over the images of this batch block (Nb is small;
    # per-image live state is only Cout tiny planes, so no vreg pressure).
    for b in range(Nb):
        # ---- in-kernel halo padding (replaces wrapper jnp.pad) ----
        xpad_ref[:, 1:H + 1, 1:W + 1] = x_ref[b].astype(jnp.float32)

        # Cout accumulators, initialized with (pointwise + folded dw) bias.
        accs = [jnp.full((H, W), pw_b_ref[co], jnp.float32)
                for co in range(Cout)]

        for c in range(C):
            # Load the padded channel plane ONCE; taps are in-register slices.
            p = xpad_ref[c]  # (H+2, W+2) f32

            # ---- depthwise 3x3: 9 shifted-slice scalar FMAs (VPU) ----
            dw = jnp.zeros((H, W), jnp.float32)
            for dy in range(3):
                for dx in range(3):
                    tap = dw_w_ref[c * 9 + dy * 3 + dx]     # scalar from SMEM
                    dw = dw + p[dy:dy + H, dx:dx + W] * tap

            # ---- fused pointwise 1x1: accumulate into Cout outputs ----
            for co in range(Cout):
                accs[co] = accs[co] + dw * pw_w_ref[co * C + c]

        for co in range(Cout):
            o_ref[b, co, :, :] = accs[co].astype(o_ref.dtype)


def _pick_batch_block(n, c, h, w, itemsize=4, target_bytes=512 * 1024):
    """Images per grid step: amortize ~0.35us/step overhead, keep >=2 steps."""
    if n <= 2:
        return 1
    per_image = max(1, c * h * w * itemsize)
    nb = max(1, min(n // 2, max(1, target_bytes // per_image)))
    while n % nb:  # keep the grid exact
        nb -= 1
    return nb


def depthwise_separable_conv(x_nchw, dw_w, dw_b, pw_w, pw_b, batch_block=None):
    """x_nchw: (N,C,H,W); dw_w: (C,1,3,3); dw_b: (C,); pw_w: (Cout,C,1,1); pw_b: (Cout,)"""
    N, C, H, W = x_nchw.shape
    Cout = pw_w.shape[0]

    nb = batch_block if batch_block is not None else _pick_batch_block(
        N, C, H, W, jnp.dtype(x_nchw.dtype).itemsize)
    assert N % nb == 0

    # Glue (no transposes, no pad): flatten weights for 1-D SMEM tables.
    dw_w_k = dw_w.reshape(C * 9).astype(jnp.float32)          # [c*9 + dy*3 + dx]
    pw_w_k = pw_w.reshape(Cout * C).astype(jnp.float32)       # [co*C + c]
    # Fold depthwise bias: pw(dw(x) + b_dw) = pw(dw(x)) + W_pw @ b_dw + b_pw
    pw_b_eff = (pw_b.astype(jnp.float32)
                + pw_w[:, :, 0, 0].astype(jnp.float32) @ dw_b.astype(jnp.float32))

    out = pl.pallas_call(
        dsconv_kernel,
        out_shape=jax.ShapeDtypeStruct((N, Cout, H, W), x_nchw.dtype),
        grid=(N // nb,),
        in_specs=[
            pl.BlockSpec((nb, C, H, W), lambda n: (n, 0, 0, 0)),
            pl.BlockSpec(memory_space=pltpu.MemorySpace.SMEM),
            pl.BlockSpec(memory_space=pltpu.MemorySpace.SMEM),
            pl.BlockSpec(memory_space=pltpu.MemorySpace.SMEM),
        ],
        out_specs=pl.BlockSpec((nb, Cout, H, W), lambda n: (n, 0, 0, 0)),
        scratch_shapes=[pltpu.VMEM((C, H + 2, W + 2), jnp.float32)],
        compiler_params=pltpu.CompilerParams(
            dimension_semantics=("parallel",)),
    )(x_nchw, dw_w_k, pw_w_k, pw_b_eff)

    return out  # NCHW, same dtype as input


def _reference(x_nchw, dw_w, dw_b, pw_w, pw_b):
    """Plain-JAX reference matching PyTorch Conv2d semantics (NCHW)."""
    C = x_nchw.shape[1]
    dn = lax.conv_dimension_numbers(x_nchw.shape, dw_w.shape,
                                    ("NCHW", "OIHW", "NCHW"))
    y = lax.conv_general_dilated(x_nchw, dw_w, window_strides=(1, 1),
                                 padding=((1, 1), (1, 1)),
                                 dimension_numbers=dn,
                                 feature_group_count=C)
    y = y + dw_b.reshape(1, C, 1, 1)
    dn2 = lax.conv_dimension_numbers(y.shape, pw_w.shape,
                                     ("NCHW", "OIHW", "NCHW"))
    z = lax.conv_general_dilated(y, pw_w, window_strides=(1, 1),
                                 padding=((0, 0), (0, 0)),
                                 dimension_numbers=dn2)
    return z + pw_b.reshape(1, -1, 1, 1)


if __name__ == "__main__":
    N, C_in, C_out, H, W = 2, 4, 8, 16, 16

    key = jax.random.PRNGKey(0)
    kx, k1, k2, k3, k4 = jax.random.split(key, 5)
    x = jax.random.normal(kx, (N, C_in, H, W), dtype=jnp.float32)

    # Deterministic parameter init (shapes from the nn.Conv2d definitions).
    dw_w = jax.random.normal(k1, (C_in, 1, 3, 3), dtype=jnp.float32) * 0.1
    dw_b = jax.random.normal(k2, (C_in,), dtype=jnp.float32) * 0.1
    pw_w = jax.random.normal(k3, (C_out, C_in, 1, 1), dtype=jnp.float32) * 0.1
    pw_b = jax.random.normal(k4, (C_out,), dtype=jnp.float32) * 0.1

    out = depthwise_separable_conv(x, dw_w, dw_b, pw_w, pw_b)
    out = jax.block_until_ready(out)

    ref = _reference(x, dw_w, dw_b, pw_w, pw_b)
    assert out.shape == (N, C_out, H, W)
    # Note: per-tap/per-channel summation order differs from XLA's conv
    # reduction order, so agreement is tolerance-level, not bitwise.
    assert jnp.allclose(out, ref, atol=1e-5, rtol=1e-5), "mismatch vs reference"

    print("KERNEL_OK")
</pallas_src>

<mosaic_0001>
module attributes {stable_mosaic.version = 11 : i64} {
  func.func @dsconv_kernel(%arg0: i32, %arg1: memref<1x4x16x16xf32, #tpu.memory_space<vmem>>, %arg2: memref<36xf32, #tpu.memory_space<smem>>, %arg3: memref<32xf32, #tpu.memory_space<smem>>, %arg4: memref<8xf32, #tpu.memory_space<smem>>, %arg5: memref<1x8x16x16xf32, #tpu.memory_space<vmem>>, %arg6: memref<4x18x18xf32, #tpu.memory_space<vmem>>) attributes {dimension_semantics = [#tpu.dimension_semantics<parallel>], iteration_bounds = array<i64: 2>, scalar_prefetch = 0 : i64, scratch_operands = 1 : i64, tpu.core_type = #tpu.core_type<tc>, window_params = [{transform_indices = @transform_0, window_bounds = array<i64: 1, 4, 16, 16>}, {transform_indices = @transform_1, window_bounds = array<i64: 36>}, {transform_indices = @transform_2, window_bounds = array<i64: 32>}, {transform_indices = @transform_3, window_bounds = array<i64: 8>}, {transform_indices = @transform_4, window_bounds = array<i64: 1, 8, 16, 16>}]} {
    %cst = arith.constant 0.000000e+00 : f32
    %0 = vector.broadcast %cst : f32 to vector<4x18x18xf32>
    %c0 = arith.constant 0 : index
    %c0_0 = arith.constant 0 : index
    %c0_1 = arith.constant 0 : index
    %1 = vector.load %arg6[%c0, %c0_0, %c0_1] : memref<4x18x18xf32, #tpu.memory_space<vmem>>, vector<4x18x18xf32>
    tpu.vector_store %arg6[%c0, %c0_0, %c0_1], %0 {strides = array<i32>} : memref<4x18x18xf32, #tpu.memory_space<vmem>>, vector<4x18x18xf32>,
    %c0_2 = arith.constant 0 : index
    %c0_3 = arith.constant 0 : index
    %c0_4 = arith.constant 0 : index
    %c0_5 = arith.constant 0 : index
    %2 = vector.load %arg1[%c0_2, %c0_3, %c0_4, %c0_5] : memref<1x4x16x16xf32, #tpu.memory_space<vmem>>, vector<1x4x16x16xf32>
    %3 = vector.shape_cast %2 : vector<1x4x16x16xf32> to vector<4x16x16xf32>
    %c0_6 = arith.constant 0 : index
    %c1 = arith.constant 1 : index
    %c1_7 = arith.constant 1 : index
    %4 = vector.load %arg6[%c0_6, %c1, %c1_7] : memref<4x18x18xf32, #tpu.memory_space<vmem>>, vector<4x16x16xf32>
    tpu.vector_store %arg6[%c0_6, %c1, %c1_7], %3 {strides = array<i32>} : memref<4x18x18xf32, #tpu.memory_space<vmem>>, vector<4x16x16xf32>,
    %c0_8 = arith.constant 0 : index
    %5 = memref.load %arg4[%c0_8] : memref<8xf32, #tpu.memory_space<smem>>
    %6 = vector.broadcast %5 : f32 to vector<16x16xf32>
    %c1_9 = arith.constant 1 : index
    %7 = memref.load %arg4[%c1_9] : memref<8xf32, #tpu.memory_space<smem>>
    %8 = vector.broadcast %7 : f32 to vector<16x16xf32>
    %c2 = arith.constant 2 : index
    %9 = memref.load %arg4[%c2] : memref<8xf32, #tpu.memory_space<smem>>
    %10 = vector.broadcast %9 : f32 to vector<16x16xf32>
    %c3 = arith.constant 3 : index
    %11 = memref.load %arg4[%c3] : memref<8xf32, #tpu.memory_space<smem>>
    %12 = vector.broadcast %11 : f32 to vector<16x16xf32>
    %c4 = arith.constant 4 : index
    %13 = memref.load %arg4[%c4] : memref<8xf32, #tpu.memory_space<smem>>
    %14 = vector.broadcast %13 : f32 to vector<16x16xf32>
    %c5 = arith.constant 5 : index
    %15 = memref.load %arg4[%c5] : memref<8xf32, #tpu.memory_space<smem>>
    %16 = vector.broadcast %15 : f32 to vector<16x16xf32>
    %c6 = arith.constant 6 : index
    %17 = memref.load %arg4[%c6] : memref<8xf32, #tpu.memory_space<smem>>
    %18 = vector.broadcast %17 : f32 to vector<16x16xf32>
    %c7 = arith.constant 7 : index
    %19 = memref.load %arg4[%c7] : memref<8xf32, #tpu.memory_space<smem>>
    %20 = vector.broadcast %19 : f32 to vector<16x16xf32>
    %c0_10 = arith.constant 0 : index
    %c0_11 = arith.constant 0 : index
    %c0_12 = arith.constant 0 : index
    %21 = vector.load %arg6[%c0_10, %c0_11, %c0_12] : memref<4x18x18xf32, #tpu.memory_space<vmem>>, vector<1x18x18xf32>
    %22 = vector.shape_cast %21 : vector<1x18x18xf32> to vector<18x18xf32>
    %cst_13 = arith.constant 0.000000e+00 : f32
    %23 = vector.broadcast %cst_13 : f32 to vector<16x16xf32>
    %c0_14 = arith.constant 0 : index
    %24 = memref.load %arg2[%c0_14] : memref<36xf32, #tpu.memory_space<smem>>
    %25 = vector.extract_strided_slice %22 {offsets = [0, 0], sizes = [16, 16], strides = [1, 1]} : vector<18x18xf32> to vector<16x16xf32>
    %26 = vector.broadcast %24 : f32 to vector<16x16xf32>
    %27 = arith.mulf %25, %26 : vector<16x16xf32>
    %28 = arith.addf %23, %27 : vector<16x16xf32>
    %c1_15 = arith.constant 1 : index
    %29 = memref.load %arg2[%c1_15] : memref<36xf32, #tpu.memory_space<smem>>
    %30 = vector.extract_strided_slice %22 {offsets = [0, 1], sizes = [16, 16], strides = [1, 1]} : vector<18x18xf32> to vector<16x16xf32>
    %31 = vector.broadcast %29 : f32 to vector<16x16xf32>
    %32 = arith.mulf %30, %31 : vector<16x16xf32>
    %33 = arith.addf %28, %32 : vector<16x16xf32>
    %c2_16 = arith.constant 2 : index
    %34 = memref.load %arg2[%c2_16] : memref<36xf32, #tpu.memory_space<smem>>
    %35 = vector.extract_strided_slice %22 {offsets = [0, 2], sizes = [16, 16], strides = [1, 1]} : vector<18x18xf32> to vector<16x16xf32>
    %36 = vector.broadcast %34 : f32 to vector<16x16xf32>
    %37 = arith.mulf %35, %36 : vector<16x16xf32>
    %38 = arith.addf %33, %37 : vector<16x16xf32>
    %c3_17 = arith.constant 3 : index
    %39 = memref.load %arg2[%c3_17] : memref<36xf32, #tpu.memory_space<smem>>
    %40 = vector.extract_strided_slice %22 {offsets = [1, 0], sizes = [16, 16], strides = [1, 1]} : vector<18x18xf32> to vector<16x16xf32>
    %41 = vector.broadcast %39 : f32 to vector<16x16xf32>
    %42 = arith.mulf %40, %41 : vector<16x16xf32>
    %43 = arith.addf %38, %42 : vector<16x16xf32>
    %c4_18 = arith.constant 4 : index
    %44 = memref.load %arg2[%c4_18] : memref<36xf32, #tpu.memory_space<smem>>
    %45 = vector.extract_strided_slice %22 {offsets = [1, 1], sizes = [16, 16], strides = [1, 1]} : vector<18x18xf32> to vector<16x16xf32>
    %46 = vector.broadcast %44 : f32 to vector<16x16xf32>
    %47 = arith.mulf %45, %46 : vector<16x16xf32>
    %48 = arith.addf %43, %47 : vector<16x16xf32>
    %c5_19 = arith.constant 5 : index
    %49 = memref.load %arg2[%c5_19] : memref<36xf32, #tpu.memory_space<smem>>
    %50 = vector.extract_strided_slice %22 {offsets = [1, 2], sizes = [16, 16], strides = [1, 1]} : vector<18x18xf32> to vector<16x16xf32>
    %51 = vector.broadcast %49 : f32 to vector<16x16xf32>
    %52 = arith.mulf %50, %51 : vector<16x16xf32>
    %53 = arith.addf %48, %52 : vector<16x16xf32>
    %c6_20 = arith.constant 6 : index
    %54 = memref.load %arg2[%c6_20] : memref<36xf32, #tpu.memory_space<smem>>
    %55 = vector.extract_strided_slice %22 {offsets = [2, 0], sizes = [16, 16], strides = [1, 1]} : vector<18x18xf32> to vector<16x16xf32>
    %56 = vector.broadcast %54 : f32 to vector<16x16xf32>
    %57 = arith.mulf %55, %56 : vector<16x16xf32>
    %58 = arith.addf %53, %57 : vector<16x16xf32>
    %c7_21 = arith.constant 7 : index
    %59 = memref.load %arg2[%c7_21] : memref<36xf32, #tpu.memory_space<smem>>
    %60 = vector.extract_strided_slice %22 {offsets = [2, 1], sizes = [16, 16], strides = [1, 1]} : vector<18x18xf32> to vector<16x16xf32>
    %61 = vector.broadcast %59 : f32 to vector<16x16xf32>
    %62 = arith.mulf %60, %61 : vector<16x16xf32>
    %63 = arith.addf %58, %62 : vector<16x16xf32>
    %c8 = arith.constant 8 : index
    %64 = memref.load %arg2[%c8] : memref<36xf32, #tpu.memory_space<smem>>
    %65 = vector.extract_strided_slice %22 {offsets = [2, 2], sizes = [16, 16], strides = [1, 1]} : vector<18x18xf32> to vector<16x16xf32>
    %66 = vector.broadcast %64 : f32 to vector<16x16xf32>
    %67 = arith.mulf %65, %66 : vector<16x16xf32>
    %68 = arith.addf %63, %67 : vector<16x16xf32>
    %c0_22 = arith.constant 0 : index
    %69 = memref.load %arg3[%c0_22] : memref<32xf32, #tpu.memory_space<smem>>
    %70 = vector.broadcast %69 : f32 to vector<16x16xf32>
    %71 = arith.mulf %68, %70 : vector<16x16xf32>
    %72 = arith.addf %6, %71 : vector<16x16xf32>
    %c4_23 = arith.constant 4 : index
    %73 = memref.load %arg3[%c4_23] : memref<32xf32, #tpu.memory_space<smem>>
    %74 = vector.broadcast %73 : f32 to vector<16x16xf32>
    %75 = arith.mulf %68, %74 : vector<16x16xf32>
    %76 = arith.addf %8, %75 : vector<16x16xf32>
    %c8_24 = arith.constant 8 : index
    %77 = memref.load %arg3[%c8_24] : memref<32xf32, #tpu.memory_space<smem>>
    %78 = vector.broadcast %77 : f32 to vector<16x16xf32>
    %79 = arith.mulf %68, %78 : vector<16x16xf32>
    %80 = arith.addf %10, %79 : vector<16x16xf32>
    %c12 = arith.constant 12 : index
    %81 = memref.load %arg3[%c12] : memref<32xf32, #tpu.memory_space<smem>>
    %82 = vector.broadcast %81 : f32 to vector<16x16xf32>
    %83 = arith.mulf %68, %82 : vector<16x16xf32>
    %84 = arith.addf %12, %83 : vector<16x16xf32>
    %c16 = arith.constant 16 : index
    %85 = memref.load %arg3[%c16] : memref<32xf32, #tpu.memory_space<smem>>
    %86 = vector.broadcast %85 : f32 to vector<16x16xf32>
    %87 = arith.mulf %68, %86 : vector<16x16xf32>
    %88 = arith.addf %14, %87 : vector<16x16xf32>
    %c20 = arith.constant 20 : index
    %89 = memref.load %arg3[%c20] : memref<32xf32, #tpu.memory_space<smem>>
    %90 = vector.broadcast %89 : f32 to vector<16x16xf32>
    %91 = arith.mulf %68, %90 : vector<16x16xf32>
    %92 = arith.addf %16, %91 : vector<16x16xf32>
    %c24 = arith.constant 24 : index
    %93 = memref.load %arg3[%c24] : memref<32xf32, #tpu.memory_space<smem>>
    %94 = vector.broadcast %93 : f32 to vector<16x16xf32>
    %95 = arith.mulf %68, %94 : vector<16x16xf32>
    %96 = arith.addf %18, %95 : vector<16x16xf32>
    %c28 = arith.constant 28 : index
    %97 = memref.load %arg3[%c28] : memref<32xf32, #tpu.memory_space<smem>>
    %98 = vector.broadcast %97 : f32 to vector<16x16xf32>
    %99 = arith.mulf %68, %98 : vector<16x16xf32>
    %100 = arith.addf %20, %99 : vector<16x16xf32>
    %c1_25 = arith.constant 1 : index
    %c0_26 = arith.constant 0 : index
    %c0_27 = arith.constant 0 : index
    %101 = vector.load %arg6[%c1_25, %c0_26, %c0_27] : memref<4x18x18xf32, #tpu.memory_space<vmem>>, vector<1x18x18xf32>
    %102 = vector.shape_cast %101 : vector<1x18x18xf32> to vector<18x18xf32>
    %cst_28 = arith.constant 0.000000e+00 : f32
    %103 = vector.broadcast %cst_28 : f32 to vector<16x16xf32>
    %c9 = arith.constant 9 : index
    %104 = memref.load %arg2[%c9] : memref<36xf32, #tpu.memory_space<smem>>
    %105 = vector.extract_strided_slice %102 {offsets = [0, 0], sizes = [16, 16], strides = [1, 1]} : vector<18x18xf32> to vector<16x16xf32>
    %106 = vector.broadcast %104 : f32 to vector<16x16xf32>
    %107 = arith.mulf %105, %106 : vector<16x16xf32>
    %108 = arith.addf %103, %107 : vector<16x16xf32>
    %c10 = arith.constant 10 : index
    %109 = memref.load %arg2[%c10] : memref<36xf32, #tpu.memory_space<smem>>
    %110 = vector.extract_strided_slice %102 {offsets = [0, 1], sizes = [16, 16], strides = [1, 1]} : vector<18x18xf32> to vector<16x16xf32>
    %111 = vector.broadcast %109 : f32 to vector<16x16xf32>
    %112 = arith.mulf %110, %111 : vector<16x16xf32>
    %113 = arith.addf %108, %112 : vector<16x16xf32>
    %c11 = arith.constant 11 : index
    %114 = memref.load %arg2[%c11] : memref<36xf32, #tpu.memory_space<smem>>
    %115 = vector.extract_strided_slice %102 {offsets = [0, 2], sizes = [16, 16], strides = [1, 1]} : vector<18x18xf32> to vector<16x16xf32>
    %116 = vector.broadcast %114 : f32 to vector<16x16xf32>
    %117 = arith.mulf %115, %116 : vector<16x16xf32>
    %118 = arith.addf %113, %117 : vector<16x16xf32>
    %c12_29 = arith.constant 12 : index
    %119 = memref.load %arg2[%c12_29] : memref<36xf32, #tpu.memory_space<smem>>
    %120 = vector.extract_strided_slice %102 {offsets = [1, 0], sizes = [16, 16], strides = [1, 1]} : vector<18x18xf32> to vector<16x16xf32>
    %121 = vector.broadcast %119 : f32 to vector<16x16xf32>
    %122 = arith.mulf %120, %121 : vector<16x16xf32>
    %123 = arith.addf %118, %122 : vector<16x16xf32>
    %c13 = arith.constant 13 : index
    %124 = memref.load %arg2[%c13] : memref<36xf32, #tpu.memory_space<smem>>
    %125 = vector.extract_strided_slice %102 {offsets = [1, 1], sizes = [16, 16], strides = [1, 1]} : vector<18x18xf32> to vector<16x16xf32>
    %126 = vector.broadcast %124 : f32 to vector<16x16xf32>
    %127 = arith.mulf %125, %126 : vector<16x16xf32>
    %128 = arith.addf %123, %127 : vector<16x16xf32>
    %c14 = arith.constant 14 : index
    %129 = memref.load %arg2[%c14] : memref<36xf32, #tpu.memory_space<smem>>
    %130 = vector.extract_strided_slice %102 {offsets = [1, 2], sizes = [16, 16], strides = [1, 1]} : vector<18x18xf32> to vector<16x16xf32>
    %131 = vector.broadcast %129 : f32 to vector<16x16xf32>
    %132 = arith.mulf %130, %131 : vector<16x16xf32>
    %133 = arith.addf %128, %132 : vector<16x16xf32>
    %c15 = arith.constant 15 : index
    %134 = memref.load %arg2[%c15] : memref<36xf32, #tpu.memory_space<smem>>
    %135 = vector.extract_strided_slice %102 {offsets = [2, 0], sizes = [16, 16], strides = [1, 1]} : vector<18x18xf32> to vector<16x16xf32>
    %136 = vector.broadcast %134 : f32 to vector<16x16xf32>
    %137 = arith.mulf %135, %136 : vector<16x16xf32>
    %138 = arith.addf %133, %137 : vector<16x16xf32>
    %c16_30 = arith.constant 16 : index
    %139 = memref.load %arg2[%c16_30] : memref<36xf32, #tpu.memory_space<smem>>
    %140 = vector.extract_strided_slice %102 {offsets = [2, 1], sizes = [16, 16], strides = [1, 1]} : vector<18x18xf32> to vector<16x16xf32>
    %141 = vector.broadcast %139 : f32 to vector<16x16xf32>
    %142 = arith.mulf %140, %141 : vector<16x16xf32>
    %143 = arith.addf %138, %142 : vector<16x16xf32>
    %c17 = arith.constant 17 : index
    %144 = memref.load %arg2[%c17] : memref<36xf32, #tpu.memory_space<smem>>
    %145 = vector.extract_strided_slice %102 {offsets = [2, 2], sizes = [16, 16], strides = [1, 1]} : vector<18x18xf32> to vector<16x16xf32>
    %146 = vector.broadcast %144 : f32 to vector<16x16xf32>
    %147 = arith.mulf %145, %146 : vector<16x16xf32>
    %148 = arith.addf %143, %147 : vector<16x16xf32>
    %c1_31 = arith.constant 1 : index
    %149 = memref.load %arg3[%c1_31] : memref<32xf32, #tpu.memory_space<smem>>
    %150 = vector.broadcast %149 : f32 to vector<16x16xf32>
    %151 = arith.mulf %148, %150 : vector<16x16xf32>
    %152 = arith.addf %72, %151 : vector<16x16xf32>
    %c5_32 = arith.constant 5 : index
    %153 = memref.load %arg3[%c5_32] : memref<32xf32, #tpu.memory_space<smem>>
    %154 = vector.broadcast %153 : f32 to vector<16x16xf32>
    %155 = arith.mulf %148, %154 : vector<16x16xf32>
    %156 = arith.addf %76, %155 : vector<16x16xf32>
    %c9_33 = arith.constant 9 : index
    %157 = memref.load %arg3[%c9_33] : memref<32xf32, #tpu.memory_space<smem>>
    %158 = vector.broadcast %157 : f32 to vector<16x16xf32>
    %159 = arith.mulf %148, %158 : vector<16x16xf32>
    %160 = arith.addf %80, %159 : vector<16x16xf32>
    %c13_34 = arith.constant 13 : index
    %161 = memref.load %arg3[%c13_34] : memref<32xf32, #tpu.memory_space<smem>>
    %162 = vector.broadcast %161 : f32 to vector<16x16xf32>
    %163 = arith.mulf %148, %162 : vector<16x16xf32>
    %164 = arith.addf %84, %163 : vector<16x16xf32>
    %c17_35 = arith.constant 17 : index
    %165 = memref.load %arg3[%c17_35] : memref<32xf32, #tpu.memory_space<smem>>
    %166 = vector.broadcast %165 : f32 to vector<16x16xf32>
    %167 = arith.mulf %148, %166 : vector<16x16xf32>
    %168 = arith.addf %88, %167 : vector<16x16xf32>
    %c21 = arith.constant 21 : index
    %169 = memref.load %arg3[%c21] : memref<32xf32, #tpu.memory_space<smem>>
    %170 = vector.broadcast %169 : f32 to vector<16x16xf32>
    %171 = arith.mulf %148, %170 : vector<16x16xf32>
    %172 = arith.addf %92, %171 : vector<16x16xf32>
    %c25 = arith.constant 25 : index
    %173 = memref.load %arg3[%c25] : memref<32xf32, #tpu.memory_space<smem>>
    %174 = vector.broadcast %173 : f32 to vector<16x16xf32>
    %175 = arith.mulf %148, %174 : vector<16x16xf32>
    %176 = arith.addf %96, %175 : vector<16x16xf32>
    %c29 = arith.constant 29 : index
    %177 = memref.load %arg3[%c29] : memref<32xf32, #tpu.memory_space<smem>>
    %178 = vector.broadcast %177 : f32 to vector<16x16xf32>
    %179 = arith.mulf %148, %178 : vector<16x16xf32>
    %180 = arith.addf %100, %179 : vector<16x16xf32>
    %c2_36 = arith.constant 2 : index
    %c0_37 = arith.constant 0 : index
    %c0_38 = arith.constant 0 : index
    %181 = vector.load %arg6[%c2_36, %c0_37, %c0_38] : memref<4x18x18xf32, #tpu.memory_space<vmem>>, vector<1x18x18xf32>
    %182 = vector.shape_cast %181 : vector<1x18x18xf32> to vector<18x18xf32>
    %cst_39 = arith.constant 0.000000e+00 : f32
    %183 = vector.broadcast %cst_39 : f32 to vector<16x16xf32>
    %c18 = arith.constant 18 : index
    %184 = memref.load %arg2[%c18] : memref<36xf32, #tpu.memory_space<smem>>
    %185 = vector.extract_strided_slice %182 {offsets = [0, 0], sizes = [16, 16], strides = [1, 1]} : vector<18x18xf32> to vector<16x16xf32>
    %186 = vector.broadcast %184 : f32 to vector<16x16xf32>
    %187 = arith.mulf %185, %186 : vector<16x16xf32>
    %188 = arith.addf %183, %187 : vector<16x16xf32>
    %c19 = arith.constant 19 : index
    %189 = memref.load %arg2[%c19] : memref<36xf32, #tpu.memory_space<smem>>
    %190 = vector.extract_strided_slice %182 {offsets = [0, 1], sizes = [16, 16], strides = [1, 1]} : vector<18x18xf32> to vector<16x16xf32>
    %191 = vector.broadcast %189 : f32 to vector<16x16xf32>
    %192 = arith.mulf %190, %191 : vector<16x16xf32>
    %193 = arith.addf %188, %192 : vector<16x16xf32>
    %c20_40 = arith.constant 20 : index
    %194 = memref.load %arg2[%c20_40] : memref<36xf32, #tpu.memory_space<smem>>
    %195 = vector.extract_strided_slice %182 {offsets = [0, 2], sizes = [16, 16], strides = [1, 1]} : vector<18x18xf32> to vector<16x16xf32>
    %196 = vector.broadcast %194 : f32 to vector<16x16xf32>
    %197 = arith.mulf %195, %196 : vector<16x16xf32>
    %198 = arith.addf %193, %197 : vector<16x16xf32>
    %c21_41 = arith.constant 21 : index
    %199 = memref.load %arg2[%c21_41] : memref<36xf32, #tpu.memory_space<smem>>
    %200 = vector.extract_strided_slice %182 {offsets = [1, 0], sizes = [16, 16], strides = [1, 1]} : vector<18x18xf32> to vector<16x16xf32>
    %201 = vector.broadcast %199 : f32 to vector<16x16xf32>
    %202 = arith.mulf %200, %201 : vector<16x16xf32>
    %203 = arith.addf %198, %202 : vector<16x16xf32>
    %c22 = arith.constant 22 : index
    %204 = memref.load %arg2[%c22] : memref<36xf32, #tpu.memory_space<smem>>
    %205 = vector.extract_strided_slice %182 {offsets = [1, 1], sizes = [16, 16], strides = [1, 1]} : vector<18x18xf32> to vector<16x16xf32>
    %206 = vector.broadcast %204 : f32 to vector<16x16xf32>
    %207 = arith.mulf %205, %206 : vector<16x16xf32>
    %208 = arith.addf %203, %207 : vector<16x16xf32>
    %c23 = arith.constant 23 : index
    %209 = memref.load %arg2[%c23] : memref<36xf32, #tpu.memory_space<smem>>
    %210 = vector.extract_strided_slice %182 {offsets = [1, 2], sizes = [16, 16], strides = [1, 1]} : vector<18x18xf32> to vector<16x16xf32>
    %211 = vector.broadcast %209 : f32 to vector<16x16xf32>
    %212 = arith.mulf %210, %211 : vector<16x16xf32>
    %213 = arith.addf %208, %212 : vector<16x16xf32>
    %c24_42 = arith.constant 24 : index
    %214 = memref.load %arg2[%c24_42] : memref<36xf32, #tpu.memory_space<smem>>
    %215 = vector.extract_strided_slice %182 {offsets = [2, 0], sizes = [16, 16], strides = [1, 1]} : vector<18x18xf32> to vector<16x16xf32>
    %216 = vector.broadcast %214 : f32 to vector<16x16xf32>
    %217 = arith.mulf %215, %216 : vector<16x16xf32>
    %218 = arith.addf %213, %217 : vector<16x16xf32>
    %c25_43 = arith.constant 25 : index
    %219 = memref.load %arg2[%c25_43] : memref<36xf32, #tpu.memory_space<smem>>
    %220 = vector.extract_strided_slice %182 {offsets = [2, 1], sizes = [16, 16], strides = [1, 1]} : vector<18x18xf32> to vector<16x16xf32>
    %221 = vector.broadcast %219 : f32 to vector<16x16xf32>
    %222 = arith.mulf %220, %221 : vector<16x16xf32>
    %223 = arith.addf %218, %222 : vector<16x16xf32>
    %c26 = arith.constant 26 : index
    %224 = memref.load %arg2[%c26] : memref<36xf32, #tpu.memory_space<smem>>
    %225 = vector.extract_strided_slice %182 {offsets = [2, 2], sizes = [16, 16], strides = [1, 1]} : vector<18x18xf32> to vector<16x16xf32>
    %226 = vector.broadcast %224 : f32 to vector<16x16xf32>
    %227 = arith.mulf %225, %226 : vector<16x16xf32>
    %228 = arith.addf %223, %227 : vector<16x16xf32>
    %c2_44 = arith.constant 2 : index
    %229 = memref.load %arg3[%c2_44] : memref<32xf32, #tpu.memory_space<smem>>
    %230 = vector.broadcast %229 : f32 to vector<16x16xf32>
    %231 = arith.mulf %228, %230 : vector<16x16xf32>
    %232 = arith.addf %152, %231 : vector<16x16xf32>
    %c6_45 = arith.constant 6 : index
    %233 = memref.load %arg3[%c6_45] : memref<32xf32, #tpu.memory_space<smem>>
    %234 = vector.broadcast %233 : f32 to vector<16x16xf32>
    %235 = arith.mulf %228, %234 : vector<16x16xf32>
    %236 = arith.addf %156, %235 : vector<16x16xf32>
    %c10_46 = arith.constant 10 : index
    %237 = memref.load %arg3[%c10_46] : memref<32xf32, #tpu.memory_space<smem>>
    %238 = vector.broadcast %237 : f32 to vector<16x16xf32>
    %239 = arith.mulf %228, %238 : vector<16x16xf32>
    %240 = arith.addf %160, %239 : vector<16x16xf32>
    %c14_47 = arith.constant 14 : index
    %241 = memref.load %arg3[%c14_47] : memref<32xf32, #tpu.memory_space<smem>>
    %242 = vector.broadcast %241 : f32 to vector<16x16xf32>
    %243 = arith.mulf %228, %242 : vector<16x16xf32>
    %244 = arith.addf %164, %243 : vector<16x16xf32>
    %c18_48 = arith.constant 18 : index
    %245 = memref.load %arg3[%c18_48] : memref<32xf32, #tpu.memory_space<smem>>
    %246 = vector.broadcast %245 : f32 to vector<16x16xf32>
    %247 = arith.mulf %228, %246 : vector<16x16xf32>
    %248 = arith.addf %168, %247 : vector<16x16xf32>
    %c22_49 = arith.constant 22 : index
    %249 = memref.load %arg3[%c22_49] : memref<32xf32, #tpu.memory_space<smem>>
    %250 = vector.broadcast %249 : f32 to vector<16x16xf32>
    %251 = arith.mulf %228, %250 : vector<16x16xf32>
    %252 = arith.addf %172, %251 : vector<16x16xf32>
    %c26_50 = arith.constant 26 : index
    %253 = memref.load %arg3[%c26_50] : memref<32xf32, #tpu.memory_space<smem>>
    %254 = vector.broadcast %253 : f32 to vector<16x16xf32>
    %255 = arith.mulf %228, %254 : vector<16x16xf32>
    %256 = arith.addf %176, %255 : vector<16x16xf32>
    %c30 = arith.constant 30 : index
    %257 = memref.load %arg3[%c30] : memref<32xf32, #tpu.memory_space<smem>>
    %258 = vector.broadcast %257 : f32 to vector<16x16xf32>
    %259 = arith.mulf %228, %258 : vector<16x16xf32>
    %260 = arith.addf %180, %259 : vector<16x16xf32>
    %c3_51 = arith.constant 3 : index
    %c0_52 = arith.constant 0 : index
    %c0_53 = arith.constant 0 : index
    %261 = vector.load %arg6[%c3_51, %c0_52, %c0_53] : memref<4x18x18xf32, #tpu.memory_space<vmem>>, vector<1x18x18xf32>
    %262 = vector.shape_cast %261 : vector<1x18x18xf32> to vector<18x18xf32>
    %cst_54 = arith.constant 0.000000e+00 : f32
    %263 = vector.broadcast %cst_54 : f32 to vector<16x16xf32>
    %c27 = arith.constant 27 : index
    %264 = memref.load %arg2[%c27] : memref<36xf32, #tpu.memory_space<smem>>
    %265 = vector.extract_strided_slice %262 {offsets = [0, 0], sizes = [16, 16], strides = [1, 1]} : vector<18x18xf32> to vector<16x16xf32>
    %266 = vector.broadcast %264 : f32 to vector<16x16xf32>
    %267 = arith.mulf %265, %266 : vector<16x16xf32>
    %268 = arith.addf %263, %267 : vector<16x16xf32>
    %c28_55 = arith.constant 28 : index
    %269 = memref.load %arg2[%c28_55] : memref<36xf32, #tpu.memory_space<smem>>
    %270 = vector.extract_strided_slice %262 {offsets = [0, 1], sizes = [16, 16], strides = [1, 1]} : vector<18x18xf32> to vector<16x16xf32>
    %271 = vector.broadcast %269 : f32 to vector<16x16xf32>
    %272 = arith.mulf %270, %271 : vector<16x16xf32>
    %273 = arith.addf %268, %272 : vector<16x16xf32>
    %c29_56 = arith.constant 29 : index
    %274 = memref.load %arg2[%c29_56] : memref<36xf32, #tpu.memory_space<smem>>
    %275 = vector.extract_strided_slice %262 {offsets = [0, 2], sizes = [16, 16], strides = [1, 1]} : vector<18x18xf32> to vector<16x16xf32>
    %276 = vector.broadcast %274 : f32 to vector<16x16xf32>
    %277 = arith.mulf %275, %276 : vector<16x16xf32>
    %278 = arith.addf %273, %277 : vector<16x16xf32>
    %c30_57 = arith.constant 30 : index
    %279 = memref.load %arg2[%c30_57] : memref<36xf32, #tpu.memory_space<smem>>
    %280 = vector.extract_strided_slice %262 {offsets = [1, 0], sizes = [16, 16], strides = [1, 1]} : vector<18x18xf32> to vector<16x16xf32>
    %281 = vector.broadcast %279 : f32 to vector<16x16xf32>
    %282 = arith.mulf %280, %281 : vector<16x16xf32>
    %283 = arith.addf %278, %282 : vector<16x16xf32>
    %c31 = arith.constant 31 : index
    %284 = memref.load %arg2[%c31] : memref<36xf32, #tpu.memory_space<smem>>
    %285 = vector.extract_strided_slice %262 {offsets = [1, 1], sizes = [16, 16], strides = [1, 1]} : vector<18x18xf32> to vector<16x16xf32>
    %286 = vector.broadcast %284 : f32 to vector<16x16xf32>
    %287 = arith.mulf %285, %286 : vector<16x16xf32>
    %288 = arith.addf %283, %287 : vector<16x16xf32>
    %c32 = arith.constant 32 : index
    %289 = memref.load %arg2[%c32] : memref<36xf32, #tpu.memory_space<smem>>
    %290 = vector.extract_strided_slice %262 {offsets = [1, 2], sizes = [16, 16], strides = [1, 1]} : vector<18x18xf32> to vector<16x16xf32>
    %291 = vector.broadcast %289 : f32 to vector<16x16xf32>
    %292 = arith.mulf %290, %291 : vector<16x16xf32>
    %293 = arith.addf %288, %292 : vector<16x16xf32>
    %c33 = arith.constant 33 : index
    %294 = memref.load %arg2[%c33] : memref<36xf32, #tpu.memory_space<smem>>
    %295 = vector.extract_strided_slice %262 {offsets = [2, 0], sizes = [16, 16], strides = [1, 1]} : vector<18x18xf32> to vector<16x16xf32>
    %296 = vector.broadcast %294 : f32 to vector<16x16xf32>
    %297 = arith.mulf %295, %296 : vector<16x16xf32>
    %298 = arith.addf %293, %297 : vector<16x16xf32>
    %c34 = arith.constant 34 : index
    %299 = memref.load %arg2[%c34] : memref<36xf32, #tpu.memory_space<smem>>
    %300 = vector.extract_strided_slice %262 {offsets = [2, 1], sizes = [16, 16], strides = [1, 1]} : vector<18x18xf32> to vector<16x16xf32>
    %301 = vector.broadcast %299 : f32 to vector<16x16xf32>
    %302 = arith.mulf %300, %301 : vector<16x16xf32>
    %303 = arith.addf %298, %302 : vector<16x16xf32>
    %c35 = arith.constant 35 : index
    %304 = memref.load %arg2[%c35] : memref<36xf32, #tpu.memory_space<smem>>
    %305 = vector.extract_strided_slice %262 {offsets = [2, 2], sizes = [16, 16], strides = [1, 1]} : vector<18x18xf32> to vector<16x16xf32>
    %306 = vector.broadcast %304 : f32 to vector<16x16xf32>
    %307 = arith.mulf %305, %306 : vector<16x16xf32>
    %308 = arith.addf %303, %307 : vector<16x16xf32>
    %c3_58 = arith.constant 3 : index
    %309 = memref.load %arg3[%c3_58] : memref<32xf32, #tpu.memory_space<smem>>
    %310 = vector.broadcast %309 : f32 to vector<16x16xf32>
    %311 = arith.mulf %308, %310 : vector<16x16xf32>
    %312 = arith.addf %232, %311 : vector<16x16xf32>
    %c7_59 = arith.constant 7 : index
    %313 = memref.load %arg3[%c7_59] : memref<32xf32, #tpu.memory_space<smem>>
    %314 = vector.broadcast %313 : f32 to vector<16x16xf32>
    %315 = arith.mulf %308, %314 : vector<16x16xf32>
    %316 = arith.addf %236, %315 : vector<16x16xf32>
    %c11_60 = arith.constant 11 : index
    %317 = memref.load %arg3[%c11_60] : memref<32xf32, #tpu.memory_space<smem>>
    %318 = vector.broadcast %317 : f32 to vector<16x16xf32>
    %319 = arith.mulf %308, %318 : vector<16x16xf32>
    %320 = arith.addf %240, %319 : vector<16x16xf32>
    %c15_61 = arith.constant 15 : index
    %321 = memref.load %arg3[%c15_61] : memref<32xf32, #tpu.memory_space<smem>>
    %322 = vector.broadcast %321 : f32 to vector<16x16xf32>
    %323 = arith.mulf %308, %322 : vector<16x16xf32>
    %324 = arith.addf %244, %323 : vector<16x16xf32>
    %c19_62 = arith.constant 19 : index
    %325 = memref.load %arg3[%c19_62] : memref<32xf32, #tpu.memory_space<smem>>
    %326 = vector.broadcast %325 : f32 to vector<16x16xf32>
    %327 = arith.mulf %308, %326 : vector<16x16xf32>
    %328 = arith.addf %248, %327 : vector<16x16xf32>
    %c23_63 = arith.constant 23 : index
    %329 = memref.load %arg3[%c23_63] : memref<32xf32, #tpu.memory_space<smem>>
    %330 = vector.broadcast %329 : f32 to vector<16x16xf32>
    %331 = arith.mulf %308, %330 : vector<16x16xf32>
    %332 = arith.addf %252, %331 : vector<16x16xf32>
    %c27_64 = arith.constant 27 : index
    %333 = memref.load %arg3[%c27_64] : memref<32xf32, #tpu.memory_space<smem>>
    %334 = vector.broadcast %333 : f32 to vector<16x16xf32>
    %335 = arith.mulf %308, %334 : vector<16x16xf32>
    %336 = arith.addf %256, %335 : vector<16x16xf32>
    %c31_65 = arith.constant 31 : index
    %337 = memref.load %arg3[%c31_65] : memref<32xf32, #tpu.memory_space<smem>>
    %338 = vector.broadcast %337 : f32 to vector<16x16xf32>
    %339 = arith.mulf %308, %338 : vector<16x16xf32>
    %340 = arith.addf %260, %339 : vector<16x16xf32>
    %c0_66 = arith.constant 0 : index
    %c0_67 = arith.constant 0 : index
    %c0_68 = arith.constant 0 : index
    %c0_69 = arith.constant 0 : index
    %341 = vector.load %arg5[%c0_66, %c0_67, %c0_68, %c0_69] : memref<1x8x16x16xf32, #tpu.memory_space<vmem>>, vector<1x1x16x16xf32>
    %342 = vector.shape_cast %341 : vector<1x1x16x16xf32> to vector<16x16xf32>
    %343 = vector.shape_cast %312 : vector<16x16xf32> to vector<1x1x16x16xf32>
    tpu.vector_store %arg5[%c0_66, %c0_67, %c0_68, %c0_69], %343 {strides = array<i32>} : memref<1x8x16x16xf32, #tpu.memory_space<vmem>>, vector<1x1x16x16xf32>,
    %c0_70 = arith.constant 0 : index
    %c1_71 = arith.constant 1 : index
    %c0_72 = arith.constant 0 : index
    %c0_73 = arith.constant 0 : index
    %344 = vector.load %arg5[%c0_70, %c1_71, %c0_72, %c0_73] : memref<1x8x16x16xf32, #tpu.memory_space<vmem>>, vector<1x1x16x16xf32>
    %345 = vector.shape_cast %344 : vector<1x1x16x16xf32> to vector<16x16xf32>
    %346 = vector.shape_cast %316 : vector<16x16xf32> to vector<1x1x16x16xf32>
    tpu.vector_store %arg5[%c0_70, %c1_71, %c0_72, %c0_73], %346 {strides = array<i32>} : memref<1x8x16x16xf32, #tpu.memory_space<vmem>>, vector<1x1x16x16xf32>,
    %c0_74 = arith.constant 0 : index
    %c2_75 = arith.constant 2 : index
    %c0_76 = arith.constant 0 : index
    %c0_77 = arith.constant 0 : index
    %347 = vector.load %arg5[%c0_74, %c2_75, %c0_76, %c0_77] : memref<1x8x16x16xf32, #tpu.memory_space<vmem>>, vector<1x1x16x16xf32>
    %348 = vector.shape_cast %347 : vector<1x1x16x16xf32> to vector<16x16xf32>
    %349 = vector.shape_cast %320 : vector<16x16xf32> to vector<1x1x16x16xf32>
    tpu.vector_store %arg5[%c0_74, %c2_75, %c0_76, %c0_77], %349 {strides = array<i32>} : memref<1x8x16x16xf32, #tpu.memory_space<vmem>>, vector<1x1x16x16xf32>,
    %c0_78 = arith.constant 0 : index
    %c3_79 = arith.constant 3 : index
    %c0_80 = arith.constant 0 : index
    %c0_81 = arith.constant 0 : index
    %350 = vector.load %arg5[%c0_78, %c3_79, %c0_80, %c0_81] : memref<1x8x16x16xf32, #tpu.memory_space<vmem>>, vector<1x1x16x16xf32>
    %351 = vector.shape_cast %350 : vector<1x1x16x16xf32> to vector<16x16xf32>
    %352 = vector.shape_cast %324 : vector<16x16xf32> to vector<1x1x16x16xf32>
    tpu.vector_store %arg5[%c0_78, %c3_79, %c0_80, %c0_81], %352 {strides = array<i32>} : memref<1x8x16x16xf32, #tpu.memory_space<vmem>>, vector<1x1x16x16xf32>,
    %c0_82 = arith.constant 0 : index
    %c4_83 = arith.constant 4 : index
    %c0_84 = arith.constant 0 : index
    %c0_85 = arith.constant 0 : index
    %353 = vector.load %arg5[%c0_82, %c4_83, %c0_84, %c0_85] : memref<1x8x16x16xf32, #tpu.memory_space<vmem>>, vector<1x1x16x16xf32>
    %354 = vector.shape_cast %353 : vector<1x1x16x16xf32> to vector<16x16xf32>
    %355 = vector.shape_cast %328 : vector<16x16xf32> to vector<1x1x16x16xf32>
    tpu.vector_store %arg5[%c0_82, %c4_83, %c0_84, %c0_85], %355 {strides = array<i32>} : memref<1x8x16x16xf32, #tpu.memory_space<vmem>>, vector<1x1x16x16xf32>,
    %c0_86 = arith.constant 0 : index
    %c5_87 = arith.constant 5 : index
    %c0_88 = arith.constant 0 : index
    %c0_89 = arith.constant 0 : index
    %356 = vector.load %arg5[%c0_86, %c5_87, %c0_88, %c0_89] : memref<1x8x16x16xf32, #tpu.memory_space<vmem>>, vector<1x1x16x16xf32>
    %357 = vector.shape_cast %356 : vector<1x1x16x16xf32> to vector<16x16xf32>
    %358 = vector.shape_cast %332 : vector<16x16xf32> to vector<1x1x16x16xf32>
    tpu.vector_store %arg5[%c0_86, %c5_87, %c0_88, %c0_89], %358 {strides = array<i32>} : memref<1x8x16x16xf32, #tpu.memory_space<vmem>>, vector<1x1x16x16xf32>,
    %c0_90 = arith.constant 0 : index
    %c6_91 = arith.constant 6 : index
    %c0_92 = arith.constant 0 : index
    %c0_93 = arith.constant 0 : index
    %359 = vector.load %arg5[%c0_90, %c6_91, %c0_92, %c0_93] : memref<1x8x16x16xf32, #tpu.memory_space<vmem>>, vector<1x1x16x16xf32>
    %360 = vector.shape_cast %359 : vector<1x1x16x16xf32> to vector<16x16xf32>
    %361 = vector.shape_cast %336 : vector<16x16xf32> to vector<1x1x16x16xf32>
    tpu.vector_store %arg5[%c0_90, %c6_91, %c0_92, %c0_93], %361 {strides = array<i32>} : memref<1x8x16x16xf32, #tpu.memory_space<vmem>>, vector<1x1x16x16xf32>,
    %c0_94 = arith.constant 0 : index
    %c7_95 = arith.constant 7 : index
    %c0_96 = arith.constant 0 : index
    %c0_97 = arith.constant 0 : index
    %362 = vector.load %arg5[%c0_94, %c7_95, %c0_96, %c0_97] : memref<1x8x16x16xf32, #tpu.memory_space<vmem>>, vector<1x1x16x16xf32>
    %363 = vector.shape_cast %362 : vector<1x1x16x16xf32> to vector<16x16xf32>
    %364 = vector.shape_cast %340 : vector<16x16xf32> to vector<1x1x16x16xf32>
    tpu.vector_store %arg5[%c0_94, %c7_95, %c0_96, %c0_97], %364 {strides = array<i32>} : memref<1x8x16x16xf32, #tpu.memory_space<vmem>>, vector<1x1x16x16xf32>,
    return
  }
  func.func @transform_0(%arg0: i32) -> (i32, i32, i32, i32) {
    %c0_i32 = arith.constant 0 : i32
    %c0_i32_0 = arith.constant 0 : i32
    %c0_i32_1 = arith.constant 0 : i32
    %c0_i32_2 = arith.constant 0 : i32
    return %arg0, %c0_i32, %c0_i32_0, %c0_i32_1 : i32, i32, i32, i32
  }
  func.func @transform_1(%arg0: i32) -> i32 {
    %c0_i32 = arith.constant 0 : i32
    %c0_i32_0 = arith.constant 0 : i32
    return %c0_i32 : i32
  }
  func.func @transform_2(%arg0: i32) -> i32 {
    %c0_i32 = arith.constant 0 : i32
    %c0_i32_0 = arith.constant 0 : i32
    return %c0_i32 : i32
  }
  func.func @transform_3(%arg0: i32) -> i32 {
    %c0_i32 = arith.constant 0 : i32
    %c0_i32_0 = arith.constant 0 : i32
    return %c0_i32 : i32
  }
  func.func @transform_4(%arg0: i32) -> (i32, i32, i32, i32) {
    %c0_i32 = arith.constant 0 : i32
    %c0_i32_0 = arith.constant 0 : i32
    %c0_i32_1 = arith.constant 0 : i32
    %c0_i32_2 = arith.constant 0 : i32
    return %arg0, %c0_i32, %c0_i32_0, %c0_i32_1 : i32, i32, i32, i32
  }
}

</mosaic_0001>

<llo_original>
// kernel: tpu_custom_call.1
$region0: #{tpu_custom_call.1}
  #allocation0 [shape = 'u32[]', space=smem, size = 0x4, offset = 0x4, fixed_abs, tag = 'smem constant byte address 0x4 - core index']
  #allocation1 [shape = 'u32[144,128]{1,0:T(1,128)}', space=vmem, size = 0x12000, scoped, tag = 'internal scratch']
  #allocation2 [shape = 'f32[4,18,18]{2,1,0:T(8,128)}', space=vmem, size = 0xc000, scoped, tag = 'scratch operand']
  %s0 = inlined_call_operand.hbm [shape: f32[2,4,16,16], index: 0, kind: input, shape index: {}]
  %s1 = inlined_call_operand.vmem [shape: f32[36], index: 1, kind: input, shape index: {}]
  %s2 = inlined_call_operand.vmem [shape: f32[32], index: 2, kind: input, shape index: {}]
  %s3 = inlined_call_operand.vmem [shape: f32[8], index: 3, kind: input, shape index: {}]
  %s4 = inlined_call_operand.hbm [shape: f32[2,8,16,16], index: 4, kind: output, shape index: {}]
  %s5 = sld [smem:[#allocation0]]
  $region65: #{tpu_custom_call.1} parent=0
    _
  %s7 = ssub.s32 1, %s5
  %s8 = scalar_select 0, %s7, %s5
  $region1: #{tpu_custom_call.1} parent=0
    #allocation3 [shape = 'u8[65536]{0}', space=vmem, size = 0x10000, scoped, tag = 'input window, operand 0']
    #allocation4 [shape = 's32[2]{0}', space=sflag, size = 0x8, scoped, tag = 'scoped memory for tpu_custom_call.1']
    #allocation5 [shape = 's32[2]{0}', space=sflag, size = 0x8, scoped, tag = 'scoped memory for tpu_custom_call.1']
    #allocation6 [shape = 's32[2]{0}', space=sflag, size = 0x8, scoped, tag = 'scoped memory for tpu_custom_call.1']
    #allocation7 [shape = 'u8[512]{0}', space=smem, size = 0x200, scoped, tag = 'input window, operand 1, single buffered']
    #allocation8 [shape = 'u8[512]{0}', space=smem, size = 0x200, scoped, tag = 'input window, operand 2, single buffered']
    #allocation9 [shape = 's32[1]{0}', space=sflag, size = 0x4, scoped, tag = 'scoped memory for tpu_custom_call.1']
    #allocation10 [shape = 'u8[512]{0}', space=smem, size = 0x200, scoped, tag = 'input window, operand 3, single buffered']
    #allocation11 [shape = 'u8[131072]{0}', space=vmem, size = 0x20000, scoped, tag = 'output window, operand 0']
    %9 = vsyncpa [#allocation4], 0
    %s10 = scalar_lea.sflag [#allocation4], 1
    %11 = vsyncpa %s10, 0
    %12 = vsyncpa [#allocation6], 0
    %13 = vsyncpa [#allocation9], 0
    %14 = vsyncpa [#allocation5], 0
    %s15 = scalar_lea.sflag [#allocation5], 1
    %16 = vsyncpa %s15, 0
    loop: start=0, step=1, limit=4
    $region2: #{tpu_custom_call.1} parent=1 // loop_pre_header
      _
    $region3: #{tpu_custom_call.1} parent=1 // loop_header
      %s18 = sphi 0, %s22
      %p19 = scmp.ge.s32.totalorder %s18, 4
      %s28 = sphi 0, %s30
      %s31 = sphi 0, %s28
      %s32 = sphi 0, %s31
      %s48 = sphi 0, %s32
      %s52 = sphi 0, %s52
      %s54 = sphi 0, %s52
      %s55 = sphi 0, %s54
      %s69 = sphi 0, %s55
      %s73 = sphi 0, %s73
      %s75 = sphi 0, %s73
      %s76 = sphi 0, %s75
      %s90 = sphi 0, %s76
      %s94 = sphi 0, %s94
      %s96 = sphi 0, %s94
      %s97 = sphi 0, %s96
      %s111 = sphi 0, %s97
      %s117 = sphi 0, %s119
      %s120 = sphi 0, %s117
      %s121 = sphi 0, %s120
      %s137 = sphi 0, %s121
    $region4: #{tpu_custom_call.1} parent=1 // loop_header_branch
      %21 = sbr.rel (%p19) target = $region8
    $region5: #{tpu_custom_call.1} parent=1 // loop_body
      %s23 = ssub.s32 %s18, 1
      %s24 = ssub.s32 %s18, 2
      %s25 = sadd.s32 %s18, 1
      %s26 = ssub.s32 %s18, %s25
      %p27 = scmp.eq.s32.totalorder %s26, 0
      %s29 = sadd.s32 %s28, 1
      %s30 = scalar_select %p27, %s28, %s29
      %p33 = pneg %p27
      %p34 = scmp.eq.s32.totalorder %s18, 1
      %p35 = por %p33, %p34
      %p36 = scmp.ne.s32.totalorder %s28, %s31
      %p37 = scmp.eq.s32.totalorder %s18, 0
      %p38 = por %p36, %p37
      %p39 = scmp.ne.s32.totalorder %s28, %s31
      %p40 = scmp.eq.s32.totalorder %s23, 1
      %p41 = por %p39, %p40
      %p42 = scmp.ne.s32.totalorder %s31, %s32
      %p43 = scmp.eq.s32.totalorder %s23, 0
      %p44 = por %p42, %p43
      %p45 = scmp.ne.s32.totalorder %s31, %s32
      %p46 = scmp.eq.s32.totalorder %s24, 1
      %p47 = por %p45, %p46
      %p49 = scmp.ne.s32.totalorder %s32, %s48
      %p50 = scmp.eq.s32.totalorder %s24, 0
      %p51 = por %p49, %p50
      %s53 = sadd.s32 %s52, 1
      %p56 = scmp.eq.s32.totalorder %s18, 1
      %p57 = scmp.ne.s32.totalorder %s52, %s54
      %p58 = scmp.eq.s32.totalorder %s18, 0
      %p59 = por %p57, %p58
      %p60 = scmp.ne.s32.totalorder %s52, %s54
      %p61 = scmp.eq.s32.totalorder %s23, 1
      %p62 = por %p60, %p61
      %p63 = scmp.ne.s32.totalorder %s54, %s55
      %p64 = scmp.eq.s32.totalorder %s23, 0
      %p65 = por %p63, %p64
      %p66 = scmp.ne.s32.totalorder %s54, %s55
      %p67 = scmp.eq.s32.totalorder %s24, 1
      %p68 = por %p66, %p67
      %p70 = scmp.ne.s32.totalorder %s55, %s69
      %p71 = scmp.eq.s32.totalorder %s24, 0
      %p72 = por %p70, %p71
      %s74 = sadd.s32 %s73, 1
      %p77 = scmp.eq.s32.totalorder %s18, 1
      %p78 = scmp.ne.s32.totalorder %s73, %s75
      %p79 = scmp.eq.s32.totalorder %s18, 0
      %p80 = por %p78, %p79
      %p81 = scmp.ne.s32.totalorder %s73, %s75
      %p82 = scmp.eq.s32.totalorder %s23, 1
      %p83 = por %p81, %p82
      %p84 = scmp.ne.s32.totalorder %s75, %s76
      %p85 = scmp.eq.s32.totalorder %s23, 0
      %p86 = por %p84, %p85
      %p87 = scmp.ne.s32.totalorder %s75, %s76
      %p88 = scmp.eq.s32.totalorder %s24, 1
      %p89 = por %p87, %p88
      %p91 = scmp.ne.s32.totalorder %s76, %s90
      %p92 = scmp.eq.s32.totalorder %s24, 0
      %p93 = por %p91, %p92
      %s95 = sadd.s32 %s94, 1
      %p98 = scmp.eq.s32.totalorder %s18, 1
      %p99 = scmp.ne.s32.totalorder %s94, %s96
      %p100 = scmp.eq.s32.totalorder %s18, 0
      %p101 = por %p99, %p100
      %p102 = scmp.ne.s32.totalorder %s94, %s96
      %p103 = scmp.eq.s32.totalorder %s23, 1
      %p104 = por %p102, %p103
      %p105 = scmp.ne.s32.totalorder %s96, %s97
      %p106 = scmp.eq.s32.totalorder %s23, 0
      %p107 = por %p105, %p106
      %p108 = scmp.ne.s32.totalorder %s96, %s97
      %p109 = scmp.eq.s32.totalorder %s24, 1
      %p110 = por %p108, %p109
      %p112 = scmp.ne.s32.totalorder %s97, %s111
      %p113 = scmp.eq.s32.totalorder %s24, 0
      %p114 = por %p112, %p113
      %s115 = ssub.s32 %s18, %s25
      %p116 = scmp.eq.s32.totalorder %s115, 0
      %s118 = sadd.s32 %s117, 1
      %s119 = scalar_select %p116, %s117, %s118
      %p122 = pneg %p116
      %p123 = scmp.eq.s32.totalorder %s18, 1
      %p124 = por %p122, %p123
      %p125 = scmp.ne.s32.totalorder %s117, %s120
      %p126 = scmp.eq.s32.totalorder %s18, 0
      %p127 = por %p125, %p126
      %p128 = scmp.ne.s32.totalorder %s117, %s120
      %p129 = scmp.eq.s32.totalorder %s23, 1
      %p130 = por %p128, %p129
      %p131 = scmp.ne.s32.totalorder %s120, %s121
      %p132 = scmp.eq.s32.totalorder %s23, 0
      %p133 = por %p131, %p132
      %p134 = scmp.ne.s32.totalorder %s120, %s121
      %p135 = scmp.eq.s32.totalorder %s24, 1
      %p136 = por %p134, %p135
      %p138 = scmp.ne.s32.totalorder %s121, %s137
      %p139 = scmp.eq.s32.totalorder %s24, 0
      %p140 = por %p138, %p139
      %p141 = scmp.le.s32.totalorder 1, %s18
      %p142 = scmp.lt.s32.totalorder %s18, 3
      %p143 = pnand %p141, %p142
      %p144 = pneg %p143
      // Predicated region
      $region9: #{tpu_custom_call.1} parent=5 // pred_check
        _
      $region10: #{tpu_custom_call.1} parent=5 // pred_check_branch
        %146 = sbr.rel (%p143) target = $region12
      $region11: #{tpu_custom_call.1} parent=5 // pred_region
        %s147 = ssub.s32 %s18, 1
        // Predicated region
        $region13: #{tpu_custom_call.1} parent=11 // pred_check
          %p148 = pneg %p65
        $region14: #{tpu_custom_call.1} parent=11 // pred_check_branch
          %150 = sbr.rel (%p148) target = $region16
        $region15: #{tpu_custom_call.1} parent=11 // pred_region
          %s152 = ssub.s32 16, 16
          %153 = vsyncadd [#allocation6], %s152
          %s155 = sshll.u32 %s1, 4
          %s156 = int_to_ptr.vmem [resolvable:$true] %s155
          %158 = dma.vmem_to_smem %s156, 16, [#allocation7], [#allocation6]
        $region16: #{tpu_custom_call.1} parent=11 // pred_fallthru
          _
        // Predicated region
        $region17: #{tpu_custom_call.1} parent=11 // pred_check
          %p159 = pneg %p86
        $region18: #{tpu_custom_call.1} parent=11 // pred_check_branch
          %161 = sbr.rel (%p159) target = $region20
        $region19: #{tpu_custom_call.1} parent=11 // pred_region
          %s163 = ssub.s32 16, 16
          %164 = vsyncadd [#allocation9], %s163
          %s166 = sshll.u32 %s2, 4
          %s167 = int_to_ptr.vmem [resolvable:$true] %s166
          %169 = dma.vmem_to_smem %s167, 16, [#allocation8], [#allocation9]
        $region20: #{tpu_custom_call.1} parent=11 // pred_fallthru
          _
        // Predicated region
        $region21: #{tpu_custom_call.1} parent=11 // pred_check
          %p170 = pneg %p107
        $region22: #{tpu_custom_call.1} parent=11 // pred_check_branch
          %172 = sbr.rel (%p170) target = $region24
        $region23: #{tpu_custom_call.1} parent=11 // pred_region
          %s174 = ssub.s32 16, 16
          %175 = vsyncadd [#allocation9], %s174
          %s177 = sshll.u32 %s3, 4
          %s178 = int_to_ptr.vmem [resolvable:$true] %s177
          %180 = dma.vmem_to_smem %s178, 16, [#allocation10], [#allocation9]
        $region24: #{tpu_custom_call.1} parent=11 // pred_fallthru
          _
      $region12: #{tpu_custom_call.1} parent=5 // pred_fallthru
        _
      %p181 = scmp.lt.s32.totalorder %s18, 2
      // Predicated region
      $region25: #{tpu_custom_call.1} parent=5 // pred_check
        %p182 = pneg %p181
      $region26: #{tpu_custom_call.1} parent=5 // pred_check_branch
        %184 = sbr.rel (%p182) target = $region28
      $region27: #{tpu_custom_call.1} parent=5 // pred_region
        // Predicated region
        $region29: #{tpu_custom_call.1} parent=27 // pred_check
          %p185 = pneg %p38
        $region30: #{tpu_custom_call.1} parent=27 // pred_check_branch
          %187 = sbr.rel (%p185) target = $region32
        $region31: #{tpu_custom_call.1} parent=27 // pred_region
          %s188 = sand.u32 %s28, 1
          %s189 = scalar_lea.sflag [#allocation4], %s188
          %s190 = sand.u32 %s28, 1
          %s191 = smul.addr %s190, 64
          %s192 = scalar_lea.vmem [#allocation3], %s191
          %s194 = ssub.s32 1024, 1024
          %195 = vsyncadd %s189, %s194
          %s196 = smul.addr %s18, 8
          %s197 = smul.addr %s196, 128
          %s198 = scalar_lea.hbm %s0, %s197
          %s199 = sshll.u32 %s192, 4
          %s200 = int_to_ptr.vmem [resolvable:$true] %s199
          %205 = dma.hbm_to_vmem [thread:$0]  %s198, 1024, %s200, %s189, 128, 128, 8
        $region32: #{tpu_custom_call.1} parent=27 // pred_fallthru
          _
      $region28: #{tpu_custom_call.1} parent=5 // pred_fallthru
        _
      %p206 = scmp.le.s32.totalorder 1, %s18
      %p207 = scmp.lt.s32.totalorder %s18, 3
      %p208 = pnand %p206, %p207
      %p209 = pneg %p208
      // Predicated region
      $region33: #{tpu_custom_call.1} parent=5 // pred_check
        _
      $region34: #{tpu_custom_call.1} parent=5 // pred_check_branch
        %211 = sbr.rel (%p208) target = $region36
      $region35: #{tpu_custom_call.1} parent=5 // pred_region
        %s212 = ssub.s32 %s18, 1
        %s213 = sand.u32 %s31, 1
        %s214 = scalar_lea.sflag [#allocation4], %s213
        %s215 = sand.u32 %s31, 1
        %s216 = smul.addr %s215, 64
        %s217 = scalar_lea.vmem [#allocation3], %s216
        // Predicated region
        $region37: #{tpu_custom_call.1} parent=35 // pred_check
          %p218 = pneg %p44
        $region38: #{tpu_custom_call.1} parent=35 // pred_check_branch
          %220 = sbr.rel (%p218) target = $region40
        $region39: #{tpu_custom_call.1} parent=35 // pred_region
          %221 = dma.done %s214, 1024
        $region40: #{tpu_custom_call.1} parent=35 // pred_fallthru
          _
        // Predicated region
        $region41: #{tpu_custom_call.1} parent=35 // pred_check
          %p222 = pneg %p65
        $region42: #{tpu_custom_call.1} parent=35 // pred_check_branch
          %224 = sbr.rel (%p222) target = $region44
        $region43: #{tpu_custom_call.1} parent=35 // pred_region
          %225 = dma.done [#allocation6], 16
        $region44: #{tpu_custom_call.1} parent=35 // pred_fallthru
          _
        // Predicated region
        $region45: #{tpu_custom_call.1} parent=35 // pred_check
          %p226 = pneg %p86
        $region46: #{tpu_custom_call.1} parent=35 // pred_check_branch
          %228 = sbr.rel (%p226) target = $region48
        $region47: #{tpu_custom_call.1} parent=35 // pred_region
          %229 = dma.done [#allocation9], 16
        $region48: #{tpu_custom_call.1} parent=35 // pred_fallthru
          _
        // Predicated region
        $region49: #{tpu_custom_call.1} parent=35 // pred_check
          %p230 = pneg %p107
        $region50: #{tpu_custom_call.1} parent=35 // pred_check_branch
          %232 = sbr.rel (%p230) target = $region52
        $region51: #{tpu_custom_call.1} parent=35 // pred_region
          %233 = dma.done [#allocation9], 16
        $region52: #{tpu_custom_call.1} parent=35 // pred_fallthru
          _
        %234 = sfence
        %s235 = sand.u32 %s31, 1
        %s236 = scalar_lea.sflag [#allocation4], %s235
        %s237 = sand.u32 %s31, 1
        %s238 = smul.addr %s237, 64
        %s239 = scalar_lea.vmem [#allocation3], %s238
        %p240 = pneg %p44
        %p241 = pneg %p41
        %p242 = pneg %p65
        %p243 = pneg %p62
        %p244 = pneg %p86
        %p245 = pneg %p83
        %p246 = pneg %p107
        %p247 = pneg %p104
        %p248 = pneg %p133
        %p249 = pneg %p130
        %s250 = sand.u32 %s120, 1
        %s251 = scalar_lea.sflag [#allocation5], %s250
        %s252 = sand.u32 %s120, 1
        %s253 = smul.addr %s252, 128
        %s254 = scalar_lea.vmem [#allocation11], %s253
        %vm255 = vcmask 146432
        %256 = vst.msk [vmem:[#allocation2] sm:$0xff] %vm255, 0.0
        %257 = vst.msk [vmem:[#allocation2 + $0x8] sm:$0xff] %vm255, 0.0
        %vm258 = vcmask 140288
        %259 = vst.msk [vmem:[#allocation2 + $0x10] sm:$0x3] %vm258, 0.0
        %260 = vst.msk [vmem:[#allocation2 + $0x18] sm:$0xff] %vm255, 0.0
        %261 = vst.msk [vmem:[#allocation2 + $0x20] sm:$0xff] %vm255, 0.0
        %262 = vst.msk [vmem:[#allocation2 + $0x28] sm:$0x3] %vm258, 0.0
        %263 = vst.msk [vmem:[#allocation2 + $0x30] sm:$0xff] %vm255, 0.0
        %264 = vst.msk [vmem:[#allocation2 + $0x38] sm:$0xff] %vm255, 0.0
        %265 = vst.msk [vmem:[#allocation2 + $0x40] sm:$0x3] %vm258, 0.0
        %266 = vst.msk [vmem:[#allocation2 + $0x48] sm:$0xff] %vm255, 0.0
        %267 = vst.msk [vmem:[#allocation2 + $0x50] sm:$0xff] %vm255, 0.0
        %268 = vst.msk [vmem:[#allocation2 + $0x58] sm:$0x3] %vm258, 0.0
        %v269 = vld [vmem:[%s217] sm:$0xff]
        %v270 = vld [vmem:[%s217 + $0x8] sm:$0xff]
        %v271 = vld [vmem:[%s217 + $0x10] sm:$0xff]
        %v272 = vld [vmem:[%s217 + $0x18] sm:$0xff]
        %v273 = vld [vmem:[%s217 + $0x20] sm:$0xff]
        %v274 = vld [vmem:[%s217 + $0x28] sm:$0xff]
        %v275 = vld [vmem:[%s217 + $0x30] sm:$0xff]
        %v276 = vld [vmem:[%s217 + $0x38] sm:$0xff]
        %285 = vrot.lane.b32.xlu0 %v269, 1
        %v286 = vpop.permute.xlu0 %285
        %287 = vrot.lane.b32.xlu0 %v270, 1
        %v288 = vpop.permute.xlu0 %287
        %289 = vrot.lane.b32.xlu0 %v271, 1
        %v290 = vpop.permute.xlu0 %289
        %291 = vrot.lane.b32.xlu0 %v272, 1
        %v292 = vpop.permute.xlu0 %291
        %293 = vrot.lane.b32.xlu0 %v273, 1
        %v294 = vpop.permute.xlu0 %293
        %295 = vrot.lane.b32.xlu0 %v274, 1
        %v296 = vpop.permute.xlu0 %295
        %297 = vrot.lane.b32.xlu0 %v275, 1
        %v298 = vpop.permute.xlu0 %297
        %299 = vrot.lane.b32.xlu0 %v276, 1
        %v300 = vpop.permute.xlu0 %299
        %vm309 = vcmask 138248
        %310 = vst.msk [vmem:[#allocation2 + $0x1] sm:$0xff] %vm309, %v286
        %311 = vst.msk [vmem:[#allocation2 + $0x9] sm:$0xff] %vm309, %v288
        %312 = vst.msk [vmem:[#allocation2 + $0x19] sm:$0xff] %vm309, %v290
        %313 = vst.msk [vmem:[#allocation2 + $0x21] sm:$0xff] %vm309, %v292
        %314 = vst.msk [vmem:[#allocation2 + $0x31] sm:$0xff] %vm309, %v294
        %315 = vst.msk [vmem:[#allocation2 + $0x39] sm:$0xff] %vm309, %v296
        %316 = vst.msk [vmem:[#allocation2 + $0x49] sm:$0xff] %vm309, %v298
        %317 = vst.msk [vmem:[#allocation2 + $0x51] sm:$0xff] %vm309, %v300
        %s318 = sld [smem:[#allocation10]]
        %v319 = vstv %s318
        %s320 = sld [smem:[#allocation10 + $0x1]]
        %v321 = vstv %s320
        %s322 = sld [smem:[#allocation10 + $0x2]]
        %v323 = vstv %s322
        %s324 = sld [smem:[#allocation10 + $0x3]]
        %v325 = vstv %s324
        %s326 = sld [smem:[#allocation10 + $0x4]]
        %v327 = vstv %s326
        %s328 = sld [smem:[#allocation10 + $0x5]]
        %v329 = vstv %s328
        %s330 = sld [smem:[#allocation10 + $0x6]]
        %v331 = vstv %s330
        %s332 = sld [smem:[#allocation10 + $0x7]]
        %v333 = vstv %s332
        %v334 = vld [vmem:[#allocation2] sm:$0xff]
        %v335 = vld [vmem:[#allocation2 + $0x8] sm:$0xff]
        %v336 = vld [vmem:[#allocation2 + $0x10] sm:$0x3]
        %s337 = sld [smem:[#allocation7]]
        %v338 = vstv %s337
        %v339 = vmul.f32 %v334, %v338
        %v340 = vmul.f32 %v335, %v338
        %v341 = vadd.f32 %v339, 0.0
        %v342 = vadd.f32 %v340, 0.0
        %s343 = sld [smem:[#allocation7 + $0x1]]
        %v344 = vstv %s343
        %v345 = vmul.f32 %v334, %v344
        %v346 = vmul.f32 %v335, %v344
        %349 = vrot.lane.b32.xlu0 %v345, 127
        %v350 = vpop.permute.xlu0 %349
        %351 = vrot.lane.b32.xlu0 %v346, 127
        %v352 = vpop.permute.xlu0 %351
        %v355 = vadd.f32 %v341, %v350
        %v356 = vadd.f32 %v342, %v352
        %s357 = sld [smem:[#allocation7 + $0x2]]
        %v358 = vstv %s357
        %v359 = vmul.f32 %v334, %v358
        %v360 = vmul.f32 %v335, %v358
        %363 = vrot.lane.b32.xlu0 %v359, 126
        %v364 = vpop.permute.xlu0 %363
        %365 = vrot.lane.b32.xlu0 %v360, 126
        %v366 = vpop.permute.xlu0 %365
        %v369 = vadd.f32 %v355, %v364
        %v370 = vadd.f32 %v356, %v366
        %s371 = sld [smem:[#allocation7 + $0x3]]
        %v372 = vstv %s371
        %v373 = vmul.f32 %v334, %v372
        %v374 = vmul.f32 %v335, %v372
        %v375 = vmul.f32 %v336, %v372
        %vm379 = vcmask 1046528
        %v380 = vrot.slane %v373, 1
        %v381 = vrot.slane %v374, 1
        %v382 = vsel %vm379, %v380, %v381
        %v383 = vrot.slane %v375, 1
        %v384 = vsel %vm379, %v381, %v383
        %v387 = vadd.f32 %v369, %v382
        %v388 = vadd.f32 %v370, %v384
        %s389 = sld [smem:[#allocation7 + $0x4]]
        %v390 = vstv %s389
        %v391 = vmul.f32 %v334, %v390
        %v392 = vmul.f32 %v335, %v390
        %v393 = vmul.f32 %v336, %v390
        %v397 = vrot.slane %v391, 1
        %v398 = vrot.slane %v392, 1
        %v399 = vsel %vm379, %v397, %v398
        %v400 = vrot.slane %v393, 1
        %v401 = vsel %vm379, %v398, %v400
        %402 = vrot.lane.b32.xlu0 %v399, 127
        %v403 = vpop.permute.xlu0 %402
        %404 = vrot.lane.b32.xlu0 %v401, 127
        %v405 = vpop.permute.xlu0 %404
        %v408 = vadd.f32 %v387, %v403
        %v409 = vadd.f32 %v388, %v405
        %s410 = sld [smem:[#allocation7 + $0x5]]
        %v411 = vstv %s410
        %v412 = vmul.f32 %v334, %v411
        %v413 = vmul.f32 %v335, %v411
        %v414 = vmul.f32 %v336, %v411
        %v418 = vrot.slane %v412, 1
        %v419 = vrot.slane %v413, 1
        %v420 = vsel %vm379, %v418, %v419
        %v421 = vrot.slane %v414, 1
        %v422 = vsel %vm379, %v419, %v421
        %423 = vrot.lane.b32.xlu0 %v420, 126
        %v424 = vpop.permute.xlu0 %423
        %425 = vrot.lane.b32.xlu0 %v422, 126
        %v426 = vpop.permute.xlu0 %425
        %v429 = vadd.f32 %v408, %v424
        %v430 = vadd.f32 %v409, %v426
        %s431 = sld [smem:[#allocation7 + $0x6]]
        %v432 = vstv %s431
        %v433 = vmul.f32 %v334, %v432
        %v434 = vmul.f32 %v335, %v432
        %v435 = vmul.f32 %v336, %v432
        %vm439 = vcmask 1045504
        %v440 = vrot.slane %v433, 2
        %v441 = vrot.slane %v434, 2
        %v442 = vsel %vm439, %v440, %v441
        %v443 = vrot.slane %v435, 2
        %v444 = vsel %vm439, %v441, %v443
        %v447 = vadd.f32 %v429, %v442
        %v448 = vadd.f32 %v430, %v444
        %s449 = sld [smem:[#allocation7 + $0x7]]
        %v450 = vstv %s449
        %v451 = vmul.f32 %v334, %v450
        %v452 = vmul.f32 %v335, %v450
        %v453 = vmul.f32 %v336, %v450
        %v457 = vrot.slane %v451, 2
        %v458 = vrot.slane %v452, 2
        %v459 = vsel %vm439, %v457, %v458
        %v460 = vrot.slane %v453, 2
        %v461 = vsel %vm439, %v458, %v460
        %462 = vrot.lane.b32.xlu0 %v459, 127
        %v463 = vpop.permute.xlu0 %462
        %464 = vrot.lane.b32.xlu0 %v461, 127
        %v465 = vpop.permute.xlu0 %464
        %v468 = vadd.f32 %v447, %v463
        %v469 = vadd.f32 %v448, %v465
        %s470 = sld [smem:[#allocation7 + $0x8]]
        %v471 = vstv %s470
        %v472 = vmul.f32 %v334, %v471
        %v473 = vmul.f32 %v335, %v471
        %v474 = vmul.f32 %v336, %v471
        %v478 = vrot.slane %v472, 2
        %v479 = vrot.slane %v473, 2
        %v480 = vsel %vm439, %v478, %v479
        %v481 = vrot.slane %v474, 2
        %v482 = vsel %vm439, %v479, %v481
        %483 = vrot.lane.b32.xlu0 %v480, 126
        %v484 = vpop.permute.xlu0 %483
        %485 = vrot.lane.b32.xlu0 %v482, 126
        %v486 = vpop.permute.xlu0 %485
        %v489 = vadd.f32 %v468, %v484
        %v490 = vadd.f32 %v469, %v486
        %s491 = sld [smem:[#allocation8]]
        %v492 = vstv %s491
        %v493 = vmul.f32 %v489, %v492
        %v494 = vmul.f32 %v490, %v492
        %v495 = vadd.f32 %v319, %v493
        %v496 = vadd.f32 %v319, %v494
        %s497 = sld [smem:[#allocation8 + $0x4]]
        %v498 = vstv %s497
        %v499 = vmul.f32 %v489, %v498
        %v500 = vmul.f32 %v490, %v498
        %v501 = vadd.f32 %v321, %v499
        %v502 = vadd.f32 %v321, %v500
        %s503 = sld [smem:[#allocation8 + $0x8]]
        %v504 = vstv %s503
        %v505 = vmul.f32 %v489, %v504
        %v506 = vmul.f32 %v490, %v504
        %v507 = vadd.f32 %v323, %v505
        %v508 = vadd.f32 %v323, %v506
        %s509 = sld [smem:[#allocation8 + $0xc]]
        %v510 = vstv %s509
        %v511 = vmul.f32 %v489, %v510
        %v512 = vmul.f32 %v490, %v510
        %v513 = vadd.f32 %v325, %v511
        %v514 = vadd.f32 %v325, %v512
        %s515 = sld [smem:[#allocation8 + $0x10]]
        %v516 = vstv %s515
        %v517 = vmul.f32 %v489, %v516
        %v518 = vmul.f32 %v490, %v516
        %v519 = vadd.f32 %v327, %v517
        %v520 = vadd.f32 %v327, %v518
        %s521 = sld [smem:[#allocation8 + $0x14]]
        %v522 = vstv %s521
        %v523 = vmul.f32 %v489, %v522
        %v524 = vmul.f32 %v490, %v522
        %v525 = vadd.f32 %v329, %v523
        %v526 = vadd.f32 %v329, %v524
        %s527 = sld [smem:[#allocation8 + $0x18]]
        %v528 = vstv %s527
        %v529 = vmul.f32 %v489, %v528
        %v530 = vmul.f32 %v490, %v528
        %v531 = vadd.f32 %v331, %v529
        %v532 = vadd.f32 %v331, %v530
        %s533 = sld [smem:[#allocation8 + $0x1c]]
        %v534 = vstv %s533
        %v535 = vmul.f32 %v489, %v534
        %v536 = vmul.f32 %v490, %v534
        %v537 = vadd.f32 %v333, %v535
        %v538 = vadd.f32 %v333, %v536
        %s539 = scalar_lea.vmem [#allocation2], 24
        %v540 = vld [vmem:[%s539] sm:$0xff]
        %v541 = vld [vmem:[%s539 + $0x8] sm:$0xff]
        %v542 = vld [vmem:[%s539 + $0x10] sm:$0x3]
        %s543 = sld [smem:[#allocation7 + $0x9]]
        %v544 = vstv %s543
        %v545 = vmul.f32 %v540, %v544
        %v546 = vmul.f32 %v541, %v544
        %v547 = vadd.f32 %v545, 0.0
        %v548 = vadd.f32 %v546, 0.0
        %s549 = sld [smem:[#allocation7 + $0xa]]
        %v550 = vstv %s549
        %v551 = vmul.f32 %v540, %v550
        %v552 = vmul.f32 %v541, %v550
        %555 = vrot.lane.b32.xlu0 %v551, 127
        %v556 = vpop.permute.xlu0 %555
        %557 = vrot.lane.b32.xlu0 %v552, 127
        %v558 = vpop.permute.xlu0 %557
        %v561 = vadd.f32 %v547, %v556
        %v562 = vadd.f32 %v548, %v558
        %s563 = sld [smem:[#allocation7 + $0xb]]
        %v564 = vstv %s563
        %v565 = vmul.f32 %v540, %v564
        %v566 = vmul.f32 %v541, %v564
        %569 = vrot.lane.b32.xlu0 %v565, 126
        %v570 = vpop.permute.xlu0 %569
        %571 = vrot.lane.b32.xlu0 %v566, 126
        %v572 = vpop.permute.xlu0 %571
        %v575 = vadd.f32 %v561, %v570
        %v576 = vadd.f32 %v562, %v572
        %s577 = sld [smem:[#allocation7 + $0xc]]
        %v578 = vstv %s577
        %v579 = vmul.f32 %v540, %v578
        %v580 = vmul.f32 %v541, %v578
        %v581 = vmul.f32 %v542, %v578
        %v585 = vrot.slane %v579, 1
        %v586 = vrot.slane %v580, 1
        %v587 = vsel %vm379, %v585, %v586
        %v588 = vrot.slane %v581, 1
        %v589 = vsel %vm379, %v586, %v588
        %v592 = vadd.f32 %v575, %v587
        %v593 = vadd.f32 %v576, %v589
        %s594 = sld [smem:[#allocation7 + $0xd]]
        %v595 = vstv %s594
        %v596 = vmul.f32 %v540, %v595
        %v597 = vmul.f32 %v541, %v595
        %v598 = vmul.f32 %v542, %v595
        %v602 = vrot.slane %v596, 1
        %v603 = vrot.slane %v597, 1
        %v604 = vsel %vm379, %v602, %v603
        %v605 = vrot.slane %v598, 1
        %v606 = vsel %vm379, %v603, %v605
        %607 = vrot.lane.b32.xlu0 %v604, 127
        %v608 = vpop.permute.xlu0 %607
        %609 = vrot.lane.b32.xlu0 %v606, 127
        %v610 = vpop.permute.xlu0 %609
        %v613 = vadd.f32 %v592, %v608
        %v614 = vadd.f32 %v593, %v610
        %s615 = sld [smem:[#allocation7 + $0xe]]
        %v616 = vstv %s615
        %v617 = vmul.f32 %v540, %v616
        %v618 = vmul.f32 %v541, %v616
        %v619 = vmul.f32 %v542, %v616
        %v623 = vrot.slane %v617, 1
        %v624 = vrot.slane %v618, 1
        %v625 = vsel %vm379, %v623, %v624
        %v626 = vrot.slane %v619, 1
        %v627 = vsel %vm379, %v624, %v626
        %628 = vrot.lane.b32.xlu0 %v625, 126
        %v629 = vpop.permute.xlu0 %628
        %630 = vrot.lane.b32.xlu0 %v627, 126
        %v631 = vpop.permute.xlu0 %630
        %v634 = vadd.f32 %v613, %v629
        %v635 = vadd.f32 %v614, %v631
        %s636 = sld [smem:[#allocation7 + $0xf]]
        %v637 = vstv %s636
        %v638 = vmul.f32 %v540, %v637
        %v639 = vmul.f32 %v541, %v637
        %v640 = vmul.f32 %v542, %v637
        %v644 = vrot.slane %v638, 2
        %v645 = vrot.slane %v639, 2
        %v646 = vsel %vm439, %v644, %v645
        %v647 = vrot.slane %v640, 2
        %v648 = vsel %vm439, %v645, %v647
        %v651 = vadd.f32 %v634, %v646
        %v652 = vadd.f32 %v635, %v648
        %s653 = sld [smem:[#allocation7 + $0x10]]
        %v654 = vstv %s653
        %v655 = vmul.f32 %v540, %v654
        %v656 = vmul.f32 %v541, %v654
        %v657 = vmul.f32 %v542, %v654
        %v661 = vrot.slane %v655, 2
        %v662 = vrot.slane %v656, 2
        %v663 = vsel %vm439, %v661, %v662
        %v664 = vrot.slane %v657, 2
        %v665 = vsel %vm439, %v662, %v664
        %666 = vrot.lane.b32.xlu0 %v663, 127
        %v667 = vpop.permute.xlu0 %666
        %668 = vrot.lane.b32.xlu0 %v665, 127
        %v669 = vpop.permute.xlu0 %668
        %v672 = vadd.f32 %v651, %v667
        %v673 = vadd.f32 %v652, %v669
        %s674 = sld [smem:[#allocation7 + $0x11]]
        %v675 = vstv %s674
        %v676 = vmul.f32 %v540, %v675
        %v677 = vmul.f32 %v541, %v675
        %v678 = vmul.f32 %v542, %v675
        %v682 = vrot.slane %v676, 2
        %v683 = vrot.slane %v677, 2
        %v684 = vsel %vm439, %v682, %v683
        %v685 = vrot.slane %v678, 2
        %v686 = vsel %vm439, %v683, %v685
        %687 = vrot.lane.b32.xlu0 %v684, 126
        %v688 = vpop.permute.xlu0 %687
        %689 = vrot.lane.b32.xlu0 %v686, 126
        %v690 = vpop.permute.xlu0 %689
        %v693 = vadd.f32 %v672, %v688
        %v694 = vadd.f32 %v673, %v690
        %s695 = sld [smem:[#allocation8 + $0x1]]
        %v696 = vstv %s695
        %v697 = vmul.f32 %v693, %v696
        %v698 = vmul.f32 %v694, %v696
        %v699 = vadd.f32 %v495, %v697
        %v700 = vadd.f32 %v496, %v698
        %s701 = sld [smem:[#allocation8 + $0x5]]
        %v702 = vstv %s701
        %v703 = vmul.f32 %v693, %v702
        %v704 = vmul.f32 %v694, %v702
        %v705 = vadd.f32 %v501, %v703
        %v706 = vadd.f32 %v502, %v704
        %s707 = sld [smem:[#allocation8 + $0x9]]
        %v708 = vstv %s707
        %v709 = vmul.f32 %v693, %v708
        %v710 = vmul.f32 %v694, %v708
        %v711 = vadd.f32 %v507, %v709
        %v712 = vadd.f32 %v508, %v710
        %s713 = sld [smem:[#allocation8 + $0xd]]
        %v714 = vstv %s713
        %v715 = vmul.f32 %v693, %v714
        %v716 = vmul.f32 %v694, %v714
        %v717 = vadd.f32 %v513, %v715
        %v718 = vadd.f32 %v514, %v716
        %s719 = sld [smem:[#allocation8 + $0x11]]
        %v720 = vstv %s719
        %v721 = vmul.f32 %v693, %v720
        %v722 = vmul.f32 %v694, %v720
        %v723 = vadd.f32 %v519, %v721
        %v724 = vadd.f32 %v520, %v722
        %s725 = sld [smem:[#allocation8 + $0x15]]
        %v726 = vstv %s725
        %v727 = vmul.f32 %v693, %v726
        %v728 = vmul.f32 %v694, %v726
        %v729 = vadd.f32 %v525, %v727
        %v730 = vadd.f32 %v526, %v728
        %s731 = sld [smem:[#allocation8 + $0x19]]
        %v732 = vstv %s731
        %v733 = vmul.f32 %v693, %v732
        %v734 = vmul.f32 %v694, %v732
        %v735 = vadd.f32 %v531, %v733
        %v736 = vadd.f32 %v532, %v734
        %s737 = sld [smem:[#allocation8 + $0x1d]]
        %v738 = vstv %s737
        %v739 = vmul.f32 %v693, %v738
        %v740 = vmul.f32 %v694, %v738
        %v741 = vadd.f32 %v537, %v739
        %v742 = vadd.f32 %v538, %v740
        %s743 = scalar_lea.vmem [#allocation2], 48
        %v744 = vld [vmem:[%s743] sm:$0xff]
        %v745 = vld [vmem:[%s743 + $0x8] sm:$0xff]
        %v746 = vld [vmem:[%s743 + $0x10] sm:$0x3]
        %s747 = sld [smem:[#allocation7 + $0x12]]
        %v748 = vstv %s747
        %v749 = vmul.f32 %v744, %v748
        %v750 = vmul.f32 %v745, %v748
        %v751 = vadd.f32 %v749, 0.0
        %v752 = vadd.f32 %v750, 0.0
        %s753 = sld [smem:[#allocation7 + $0x13]]
        %v754 = vstv %s753
        %v755 = vmul.f32 %v744, %v754
        %v756 = vmul.f32 %v745, %v754
        %759 = vrot.lane.b32.xlu0 %v755, 127
        %v760 = vpop.permute.xlu0 %759
        %761 = vrot.lane.b32.xlu0 %v756, 127
        %v762 = vpop.permute.xlu0 %761
        %v765 = vadd.f32 %v751, %v760
        %v766 = vadd.f32 %v752, %v762
        %s767 = sld [smem:[#allocation7 + $0x14]]
        %v768 = vstv %s767
        %v769 = vmul.f32 %v744, %v768
        %v770 = vmul.f32 %v745, %v768
        %773 = vrot.lane.b32.xlu0 %v769, 126
        %v774 = vpop.permute.xlu0 %773
        %775 = vrot.lane.b32.xlu0 %v770, 126
        %v776 = vpop.permute.xlu0 %775
        %v779 = vadd.f32 %v765, %v774
        %v780 = vadd.f32 %v766, %v776
        %s781 = sld [smem:[#allocation7 + $0x15]]
        %v782 = vstv %s781
        %v783 = vmul.f32 %v744, %v782
        %v784 = vmul.f32 %v745, %v782
        %v785 = vmul.f32 %v746, %v782
        %v789 = vrot.slane %v783, 1
        %v790 = vrot.slane %v784, 1
        %v791 = vsel %vm379, %v789, %v790
        %v792 = vrot.slane %v785, 1
        %v793 = vsel %vm379, %v790, %v792
        %v796 = vadd.f32 %v779, %v791
        %v797 = vadd.f32 %v780, %v793
        %s798 = sld [smem:[#allocation7 + $0x16]]
        %v799 = vstv %s798
        %v800 = vmul.f32 %v744, %v799
        %v801 = vmul.f32 %v745, %v799
        %v802 = vmul.f32 %v746, %v799
        %v806 = vrot.slane %v800, 1
        %v807 = vrot.slane %v801, 1
        %v808 = vsel %vm379, %v806, %v807
        %v809 = vrot.slane %v802, 1
        %v810 = vsel %vm379, %v807, %v809
        %811 = vrot.lane.b32.xlu0 %v808, 127
        %v812 = vpop.permute.xlu0 %811
        %813 = vrot.lane.b32.xlu0 %v810, 127
        %v814 = vpop.permute.xlu0 %813
        %v817 = vadd.f32 %v796, %v812
        %v818 = vadd.f32 %v797, %v814
        %s819 = sld [smem:[#allocation7 + $0x17]]
        %v820 = vstv %s819
        %v821 = vmul.f32 %v744, %v820
        %v822 = vmul.f32 %v745, %v820
        %v823 = vmul.f32 %v746, %v820
        %v827 = vrot.slane %v821, 1
        %v828 = vrot.slane %v822, 1
        %v829 = vsel %vm379, %v827, %v828
        %v830 = vrot.slane %v823, 1
        %v831 = vsel %vm379, %v828, %v830
        %832 = vrot.lane.b32.xlu0 %v829, 126
        %v833 = vpop.permute.xlu0 %832
        %834 = vrot.lane.b32.xlu0 %v831, 126
        %v835 = vpop.permute.xlu0 %834
        %v838 = vadd.f32 %v817, %v833
        %v839 = vadd.f32 %v818, %v835
        %s840 = sld [smem:[#allocation7 + $0x18]]
        %v841 = vstv %s840
        %v842 = vmul.f32 %v744, %v841
        %v843 = vmul.f32 %v745, %v841
        %v844 = vmul.f32 %v746, %v841
        %v848 = vrot.slane %v842, 2
        %v849 = vrot.slane %v843, 2
        %v850 = vsel %vm439, %v848, %v849
        %v851 = vrot.slane %v844, 2
        %v852 = vsel %vm439, %v849, %v851
        %v855 = vadd.f32 %v838, %v850
        %v856 = vadd.f32 %v839, %v852
        %s857 = sld [smem:[#allocation7 + $0x19]]
        %v858 = vstv %s857
        %v859 = vmul.f32 %v744, %v858
        %v860 = vmul.f32 %v745, %v858
        %v861 = vmul.f32 %v746, %v858
        %v865 = vrot.slane %v859, 2
        %v866 = vrot.slane %v860, 2
        %v867 = vsel %vm439, %v865, %v866
        %v868 = vrot.slane %v861, 2
        %v869 = vsel %vm439, %v866, %v868
        %870 = vrot.lane.b32.xlu0 %v867, 127
        %v871 = vpop.permute.xlu0 %870
        %872 = vrot.lane.b32.xlu0 %v869, 127
        %v873 = vpop.permute.xlu0 %872
        %v876 = vadd.f32 %v855, %v871
        %v877 = vadd.f32 %v856, %v873
        %s878 = sld [smem:[#allocation7 + $0x1a]]
        %v879 = vstv %s878
        %v880 = vmul.f32 %v744, %v879
        %v881 = vmul.f32 %v745, %v879
        %v882 = vmul.f32 %v746, %v879
        %v886 = vrot.slane %v880, 2
        %v887 = vrot.slane %v881, 2
        %v888 = vsel %vm439, %v886, %v887
        %v889 = vrot.slane %v882, 2
        %v890 = vsel %vm439, %v887, %v889
        %891 = vrot.lane.b32.xlu0 %v888, 126
        %v892 = vpop.permute.xlu0 %891
        %893 = vrot.lane.b32.xlu0 %v890, 126
        %v894 = vpop.permute.xlu0 %893
        %v897 = vadd.f32 %v876, %v892
        %v898 = vadd.f32 %v877, %v894
        %s899 = sld [smem:[#allocation8 + $0x2]]
        %v900 = vstv %s899
        %v901 = vmul.f32 %v897, %v900
        %v902 = vmul.f32 %v898, %v900
        %v903 = vadd.f32 %v699, %v901
        %v904 = vadd.f32 %v700, %v902
        %s905 = sld [smem:[#allocation8 + $0x6]]
        %v906 = vstv %s905
        %v907 = vmul.f32 %v897, %v906
        %v908 = vmul.f32 %v898, %v906
        %v909 = vadd.f32 %v705, %v907
        %v910 = vadd.f32 %v706, %v908
        %s911 = sld [smem:[#allocation8 + $0xa]]
        %v912 = vstv %s911
        %v913 = vmul.f32 %v897, %v912
        %v914 = vmul.f32 %v898, %v912
        %v915 = vadd.f32 %v711, %v913
        %v916 = vadd.f32 %v712, %v914
        %s917 = sld [smem:[#allocation8 + $0xe]]
        %v918 = vstv %s917
        %v919 = vmul.f32 %v897, %v918
        %v920 = vmul.f32 %v898, %v918
        %v921 = vadd.f32 %v717, %v919
        %v922 = vadd.f32 %v718, %v920
        %s923 = sld [smem:[#allocation8 + $0x12]]
        %v924 = vstv %s923
        %v925 = vmul.f32 %v897, %v924
        %v926 = vmul.f32 %v898, %v924
        %v927 = vadd.f32 %v723, %v925
        %v928 = vadd.f32 %v724, %v926
        %s929 = sld [smem:[#allocation8 + $0x16]]
        %v930 = vstv %s929
        %v931 = vmul.f32 %v897, %v930
        %v932 = vmul.f32 %v898, %v930
        %v933 = vadd.f32 %v729, %v931
        %v934 = vadd.f32 %v730, %v932
        %s935 = sld [smem:[#allocation8 + $0x1a]]
        %v936 = vstv %s935
        %v937 = vmul.f32 %v897, %v936
        %v938 = vmul.f32 %v898, %v936
        %v939 = vadd.f32 %v735, %v937
        %v940 = vadd.f32 %v736, %v938
        %s941 = sld [smem:[#allocation8 + $0x1e]]
        %v942 = vstv %s941
        %v943 = vmul.f32 %v897, %v942
        %v944 = vmul.f32 %v898, %v942
        %v945 = vadd.f32 %v741, %v943
        %v946 = vadd.f32 %v742, %v944
        %s947 = scalar_lea.vmem [#allocation2], 72
        %v948 = vld [vmem:[%s947] sm:$0xff]
        %v949 = vld [vmem:[%s947 + $0x8] sm:$0xff]
        %v950 = vld [vmem:[%s947 + $0x10] sm:$0x3]
        %s951 = sld [smem:[#allocation7 + $0x1b]]
        %v952 = vstv %s951
        %v953 = vmul.f32 %v948, %v952
        %v954 = vmul.f32 %v949, %v952
        %v955 = vadd.f32 %v953, 0.0
        %v956 = vadd.f32 %v954, 0.0
        %s957 = sld [smem:[#allocation7 + $0x1c]]
        %v958 = vstv %s957
        %v959 = vmul.f32 %v948, %v958
        %v960 = vmul.f32 %v949, %v958
        %963 = vrot.lane.b32.xlu0 %v959, 127
        %v964 = vpop.permute.xlu0 %963
        %965 = vrot.lane.b32.xlu0 %v960, 127
        %v966 = vpop.permute.xlu0 %965
        %v969 = vadd.f32 %v955, %v964
        %v970 = vadd.f32 %v956, %v966
        %s971 = sld [smem:[#allocation7 + $0x1d]]
        %v972 = vstv %s971
        %v973 = vmul.f32 %v948, %v972
        %v974 = vmul.f32 %v949, %v972
        %977 = vrot.lane.b32.xlu0 %v973, 126
        %v978 = vpop.permute.xlu0 %977
        %979 = vrot.lane.b32.xlu0 %v974, 126
        %v980 = vpop.permute.xlu0 %979
        %v983 = vadd.f32 %v969, %v978
        %v984 = vadd.f32 %v970, %v980
        %s985 = sld [smem:[#allocation7 + $0x1e]]
        %v986 = vstv %s985
        %v987 = vmul.f32 %v948, %v986
        %v988 = vmul.f32 %v949, %v986
        %v989 = vmul.f32 %v950, %v986
        %v993 = vrot.slane %v987, 1
        %v994 = vrot.slane %v988, 1
        %v995 = vsel %vm379, %v993, %v994
        %v996 = vrot.slane %v989, 1
        %v997 = vsel %vm379, %v994, %v996
        %v1000 = vadd.f32 %v983, %v995
        %v1001 = vadd.f32 %v984, %v997
        %s1002 = sld [smem:[#allocation7 + $0x1f]]
        %v1003 = vstv %s1002
        %v1004 = vmul.f32 %v948, %v1003
        %v1005 = vmul.f32 %v949, %v1003
        %v1006 = vmul.f32 %v950, %v1003
        %v1010 = vrot.slane %v1004, 1
        %v1011 = vrot.slane %v1005, 1
        %v1012 = vsel %vm379, %v1010, %v1011
        %v1013 = vrot.slane %v1006, 1
        %v1014 = vsel %vm379, %v1011, %v1013
        %1015 = vrot.lane.b32.xlu0 %v1012, 127
        %v1016 = vpop.permute.xlu0 %1015
        %1017 = vrot.lane.b32.xlu0 %v1014, 127
        %v1018 = vpop.permute.xlu0 %1017
        %v1021 = vadd.f32 %v1000, %v1016
        %v1022 = vadd.f32 %v1001, %v1018
        %s1023 = sld [smem:[#allocation7 + $0x20]]
        %v1024 = vstv %s1023
        %v1025 = vmul.f32 %v948, %v1024
        %v1026 = vmul.f32 %v949, %v1024
        %v1027 = vmul.f32 %v950, %v1024
        %v1031 = vrot.slane %v1025, 1
        %v1032 = vrot.slane %v1026, 1
        %v1033 = vsel %vm379, %v1031, %v1032
        %v1034 = vrot.slane %v1027, 1
        %v1035 = vsel %vm379, %v1032, %v1034
        %1036 = vrot.lane.b32.xlu0 %v1033, 126
        %v1037 = vpop.permute.xlu0 %1036
        %1038 = vrot.lane.b32.xlu0 %v1035, 126
        %v1039 = vpop.permute.xlu0 %1038
        %v1042 = vadd.f32 %v1021, %v1037
        %v1043 = vadd.f32 %v1022, %v1039
        %s1044 = sld [smem:[#allocation7 + $0x21]]
        %v1045 = vstv %s1044
        %v1046 = vmul.f32 %v948, %v1045
        %v1047 = vmul.f32 %v949, %v1045
        %v1048 = vmul.f32 %v950, %v1045
        %v1052 = vrot.slane %v1046, 2
        %v1053 = vrot.slane %v1047, 2
        %v1054 = vsel %vm439, %v1052, %v1053
        %v1055 = vrot.slane %v1048, 2
        %v1056 = vsel %vm439, %v1053, %v1055
        %v1059 = vadd.f32 %v1042, %v1054
        %v1060 = vadd.f32 %v1043, %v1056
        %s1061 = sld [smem:[#allocation7 + $0x22]]
        %v1062 = vstv %s1061
        %v1063 = vmul.f32 %v948, %v1062
        %v1064 = vmul.f32 %v949, %v1062
        %v1065 = vmul.f32 %v950, %v1062
        %v1069 = vrot.slane %v1063, 2
        %v1070 = vrot.slane %v1064, 2
        %v1071 = vsel %vm439, %v1069, %v1070
        %v1072 = vrot.slane %v1065, 2
        %v1073 = vsel %vm439, %v1070, %v1072
        %1074 = vrot.lane.b32.xlu0 %v1071, 127
        %v1075 = vpop.permute.xlu0 %1074
        %1076 = vrot.lane.b32.xlu0 %v1073, 127
        %v1077 = vpop.permute.xlu0 %1076
        %v1080 = vadd.f32 %v1059, %v1075
        %v1081 = vadd.f32 %v1060, %v1077
        %s1082 = sld [smem:[#allocation7 + $0x23]]
        %v1083 = vstv %s1082
        %v1084 = vmul.f32 %v948, %v1083
        %v1085 = vmul.f32 %v949, %v1083
        %v1086 = vmul.f32 %v950, %v1083
        %v1090 = vrot.slane %v1084, 2
        %v1091 = vrot.slane %v1085, 2
        %v1092 = vsel %vm439, %v1090, %v1091
        %v1093 = vrot.slane %v1086, 2
        %v1094 = vsel %vm439, %v1091, %v1093
        %1095 = vrot.lane.b32.xlu0 %v1092, 126
        %v1096 = vpop.permute.xlu0 %1095
        %1097 = vrot.lane.b32.xlu0 %v1094, 126
        %v1098 = vpop.permute.xlu0 %1097
        %v1101 = vadd.f32 %v1080, %v1096
        %v1102 = vadd.f32 %v1081, %v1098
        %s1103 = sld [smem:[#allocation8 + $0x3]]
        %v1104 = vstv %s1103
        %v1105 = vmul.f32 %v1101, %v1104
        %v1106 = vmul.f32 %v1102, %v1104
        %v1107 = vadd.f32 %v903, %v1105
        %v1108 = vadd.f32 %v904, %v1106
        %s1109 = sld [smem:[#allocation8 + $0x7]]
        %v1110 = vstv %s1109
        %v1111 = vmul.f32 %v1101, %v1110
        %v1112 = vmul.f32 %v1102, %v1110
        %v1113 = vadd.f32 %v909, %v1111
        %v1114 = vadd.f32 %v910, %v1112
        %s1115 = sld [smem:[#allocation8 + $0xb]]
        %v1116 = vstv %s1115
        %v1117 = vmul.f32 %v1101, %v1116
        %v1118 = vmul.f32 %v1102, %v1116
        %v1119 = vadd.f32 %v915, %v1117
        %v1120 = vadd.f32 %v916, %v1118
        %s1121 = sld [smem:[#allocation8 + $0xf]]
        %v1122 = vstv %s1121
        %v1123 = vmul.f32 %v1101, %v1122
        %v1124 = vmul.f32 %v1102, %v1122
        %v1125 = vadd.f32 %v921, %v1123
        %v1126 = vadd.f32 %v922, %v1124
        %s1127 = sld [smem:[#allocation8 + $0x13]]
        %v1128 = vstv %s1127
        %v1129 = vmul.f32 %v1101, %v1128
        %v1130 = vmul.f32 %v1102, %v1128
        %v1131 = vadd.f32 %v927, %v1129
        %v1132 = vadd.f32 %v928, %v1130
        %s1133 = sld [smem:[#allocation8 + $0x17]]
        %v1134 = vstv %s1133
        %v1135 = vmul.f32 %v1101, %v1134
        %v1136 = vmul.f32 %v1102, %v1134
        %v1137 = vadd.f32 %v933, %v1135
        %v1138 = vadd.f32 %v934, %v1136
        %s1139 = sld [smem:[#allocation8 + $0x1b]]
        %v1140 = vstv %s1139
        %v1141 = vmul.f32 %v1101, %v1140
        %v1142 = vmul.f32 %v1102, %v1140
        %v1143 = vadd.f32 %v939, %v1141
        %v1144 = vadd.f32 %v940, %v1142
        %s1145 = sld [smem:[#allocation8 + $0x1f]]
        %v1146 = vstv %s1145
        %v1147 = vmul.f32 %v1101, %v1146
        %v1148 = vmul.f32 %v1102, %v1146
        %v1149 = vadd.f32 %v945, %v1147
        %v1150 = vadd.f32 %v946, %v1148
        %vm1151 = vcmask 130048
        %1152 = vst.msk [vmem:[%s254] sm:$0xff] %vm1151, %v1107
        %1153 = vst.msk [vmem:[%s254 + $0x8] sm:$0xff] %vm1151, %v1108
        %s1154 = scalar_lea.vmem %s254, 16 [#allocation11]
        %1155 = vst.msk [vmem:[%s1154] sm:$0xff] %vm1151, %v1113
        %1156 = vst.msk [vmem:[%s1154 + $0x8] sm:$0xff] %vm1151, %v1114
        %s1157 = scalar_lea.vmem %s254, 32 [#allocation11]
        %1158 = vst.msk [vmem:[%s1157] sm:$0xff] %vm1151, %v1119
        %1159 = vst.msk [vmem:[%s1157 + $0x8] sm:$0xff] %vm1151, %v1120
        %s1160 = scalar_lea.vmem %s254, 48 [#allocation11]
        %1161 = vst.msk [vmem:[%s1160] sm:$0xff] %vm1151, %v1125
        %1162 = vst.msk [vmem:[%s1160 + $0x8] sm:$0xff] %vm1151, %v1126
        %s1163 = scalar_lea.vmem %s254, 64 [#allocation11]
        %1164 = vst.msk [vmem:[%s1163] sm:$0xff] %vm1151, %v1131
        %1165 = vst.msk [vmem:[%s1163 + $0x8] sm:$0xff] %vm1151, %v1132
        %s1166 = scalar_lea.vmem %s254, 80 [#allocation11]
        %1167 = vst.msk [vmem:[%s1166] sm:$0xff] %vm1151, %v1137
        %1168 = vst.msk [vmem:[%s1166 + $0x8] sm:$0xff] %vm1151, %v1138
        %s1169 = scalar_lea.vmem %s254, 96 [#allocation11]
        %1170 = vst.msk [vmem:[%s1169] sm:$0xff] %vm1151, %v1143
        %1171 = vst.msk [vmem:[%s1169 + $0x8] sm:$0xff] %vm1151, %v1144
        %s1172 = scalar_lea.vmem %s254, 112 [#allocation11]
        %1173 = vst.msk [vmem:[%s1172] sm:$0xff] %vm1151, %v1149
        %1174 = vst.msk [vmem:[%s1172 + $0x8] sm:$0xff] %vm1151, %v1150
        %s1175 = sand.u32 %s120, 1
        %s1176 = scalar_lea.sflag [#allocation5], %s1175
        %s1177 = sand.u32 %s120, 1
        %s1178 = smul.addr %s1177, 128
        %s1179 = scalar_lea.vmem [#allocation11], %s1178
        // Predicated region
        $region53: #{tpu_custom_call.1} parent=35 // pred_check
          %p1180 = pneg %p130
        $region54: #{tpu_custom_call.1} parent=35 // pred_check_branch
          %1182 = sbr.rel (%p1180) target = $region56
        $region55: #{tpu_custom_call.1} parent=35 // pred_region
          %s1184 = ssub.s32 2048, 2048
          %1185 = vsyncadd %s1176, %s1184
          %s1186 = smul.addr %s23, 16
          %s1187 = smul.addr %s1186, 128
          %s1188 = scalar_lea.hbm %s4, %s1187
          %s1189 = sshll.u32 %s1179, 4
          %s1190 = int_to_ptr.vmem [resolvable:$true] %s1189
          %1195 = dma.vmem_to_hbm [thread:$0]  %s1190, 2048, %s1188, %s1176, 128, 128, 8
        $region56: #{tpu_custom_call.1} parent=35 // pred_fallthru
          _
      $region36: #{tpu_custom_call.1} parent=5 // pred_fallthru
        _
      %p1196 = scmp.le.s32.totalorder 2, %s18
      // Predicated region
      $region57: #{tpu_custom_call.1} parent=5 // pred_check
        %p1197 = pneg %p1196
      $region58: #{tpu_custom_call.1} parent=5 // pred_check_branch
        %1199 = sbr.rel (%p1197) target = $region60
      $region59: #{tpu_custom_call.1} parent=5 // pred_region
        %s1200 = ssub.s32 %s18, 2
        // Predicated region
        $region61: #{tpu_custom_call.1} parent=59 // pred_check
          %p1201 = pneg %p136
        $region62: #{tpu_custom_call.1} parent=59 // pred_check_branch
          %1203 = sbr.rel (%p1201) target = $region64
        $region63: #{tpu_custom_call.1} parent=59 // pred_region
          %s1204 = sand.u32 %s121, 1
          %s1205 = scalar_lea.sflag [#allocation5], %s1204
          %s1206 = sand.u32 %s121, 1
          %s1207 = smul.addr %s1206, 128
          %s1208 = scalar_lea.vmem [#allocation11], %s1207
          %1209 = dma.done %s1205, 2048
        $region64: #{tpu_custom_call.1} parent=59 // pred_fallthru
          _
      $region60: #{tpu_custom_call.1} parent=5 // pred_fallthru
        _
    $region6: #{tpu_custom_call.1} parent=1 // loop_footer
      %s22 = sadd.s32 1, %s18
    $region7: #{tpu_custom_call.1} parent=1 // loop_footer_branch
      %17 = sbr.rel target = $region3
    $region8: #{tpu_custom_call.1} parent=1 // loop_exit
      _
    %1210 = vsyncpa [#allocation4], 1
    %s1211 = scalar_lea.sflag [#allocation4], 1
    %1212 = vsyncpa %s1211, 1
    %1213 = vsyncpa [#allocation5], 1
    %s1214 = scalar_lea.sflag [#allocation5], 1
    %1215 = vsyncpa %s1214, 1
    %1216 = vsyncpa [#allocation6], 1
    %s1217 = scalar_lea.sflag [#allocation6], 1
    %1218 = vsyncpa %s1217, 1
    %1219 = vsyncpa [#allocation9], 1

</llo_original>
